<compile_context>
chip_gen: v7x
topology: tpu7x:2x2x1
jax: 0.10.0
libtpu: 0.0.40
codegen_flags: <defaults>
</compile_context>

<pallas_src>
import functools

import jax
import jax.numpy as jnp
from jax.experimental import pallas as pl
from jax.experimental.pallas import tpu as pltpu


def _round_up(x, m):
    return (x + m - 1) // m * m


def _batch_tile(b_pad):
    """Split batch into 2 tiles (parallel grid axis) when it is big enough."""
    if b_pad >= 16 and b_pad % 16 == 0:
        return b_pad // 2
    return b_pad


def _const_spec(block_shape, index_map):
    """BlockSpec for a grid-constant operand; single-buffered when supported."""
    try:
        return pl.BlockSpec(block_shape, index_map, pipeline_mode=pl.Buffered(1))
    except Exception:  # older API without pipeline_mode: fall back silently
        return pl.BlockSpec(block_shape, index_map)


def _vmem_limit_bytes(est_bytes):
    """Explicit scoped-VMEM budget: est + headroom, clamped to the chip."""
    try:
        cap = int(pltpu.get_tpu_info().vmem_capacity_bytes)
    except Exception:
        cap = 64 << 20
    if not cap or cap < (48 << 20):
        cap = 64 << 20
    limit = max(int(est_bytes) + (4 << 20), 32 << 20)
    return int(min(limit, int(cap * 3 // 4)))


# ----------------------------------------------------------------------------
# GRU recurrence kernels.
# The input-side projection gx = emb[token] @ [W_ir|W_iz|W_in] (+ folded
# biases) is a precomputed table gather, so only h @ [W_hr|W_hz|W_hn] remains
# in the recurrence:
#   gh = h @ W_h_cat
#   r  = sigmoid(gx_r + gh_r)
#   z  = sigmoid(gx_z + gh_z)
#   n  = tanh(gx_n + r * (gh_n + b_hn))
#   h' = n + z * (h - n)
# Grid: (batch tiles "parallel", time chunks "arbitrary"); h carried across
# chunks in a VMEM scratch; each chunk statically unrolled.
# ----------------------------------------------------------------------------
def _gru_encoder_kernel(gx_ref, whc_ref, bhn_ref, h0_ref, hn_ref, h_scr, *,
                        t_real, n_chunks):
    c = pl.program_id(1)

    @pl.when(c == 0)
    def _():
        h_scr[...] = h0_ref[...]

    h = h_scr[...]
    t_chunk = gx_ref.shape[0]
    hdim = h0_ref.shape[-1]
    whc = whc_ref[...]
    bhn_b = jnp.broadcast_to(bhn_ref[...], h.shape)        # hoisted broadcast

    for tt in range(t_chunk):
        gx = gx_ref[tt]                                    # (bt, 3H)
        gh = jnp.dot(h, whc, preferred_element_type=jnp.float32)
        r = jax.nn.sigmoid(gx[:, :hdim] + gh[:, :hdim])
        z = jax.nn.sigmoid(gx[:, hdim:2 * hdim] + gh[:, hdim:2 * hdim])
        n = jnp.tanh(gx[:, 2 * hdim:] + r * (gh[:, 2 * hdim:] + bhn_b))
        h_new = n + z * (h - n)
        # Only tail steps of the last chunk can be time-padding; mask exactly
        # those (statically decided which tt need it) so h_n stays exact.
        if (n_chunks - 1) * t_chunk + tt >= t_real:
            valid = ((c * t_chunk + tt) < t_real).astype(jnp.float32)
            h = h + valid * (h_new - h)
        else:
            h = h_new
    h_scr[...] = h

    @pl.when(c == n_chunks - 1)
    def _():
        hn_ref[...] = h


def _gru_decoder_kernel(gx_ref, whc_ref, bhn_ref, h0_ref, wgen_ref, bgen_ref,
                        logits_ref, h_scr, hseq_scr):
    c = pl.program_id(1)

    @pl.when(c == 0)
    def _():
        h_scr[...] = h0_ref[...]

    h = h_scr[...]
    bt = h.shape[0]
    t_chunk = hseq_scr.shape[1]
    hdim = h0_ref.shape[-1]
    vdim = wgen_ref.shape[-1]
    whc = whc_ref[...]
    bhn_b = jnp.broadcast_to(bhn_ref[...], h.shape)        # hoisted broadcast

    # Serial recurrence: only the (bt, H) @ (H, 3H) matmul is on the dep chain.
    for tt in range(t_chunk):
        gx = gx_ref[tt]                                    # (bt, 3H)
        gh = jnp.dot(h, whc, preferred_element_type=jnp.float32)
        r = jax.nn.sigmoid(gx[:, :hdim] + gh[:, :hdim])
        z = jax.nn.sigmoid(gx[:, hdim:2 * hdim] + gh[:, hdim:2 * hdim])
        n = jnp.tanh(gx[:, 2 * hdim:] + r * (gh[:, 2 * hdim:] + bhn_b))
        h = n + z * (h - n)
        hseq_scr[:, tt, :] = h
    h_scr[...] = h

    # Hoisted generator: one big MXU call over the whole chunk + one
    # unmasked, lane-dense full-block store (t_chunk is a multiple of 8 so the
    # (bt, tc, H) -> (bt*tc, H) reshape is tile-aligned).
    h_all = hseq_scr[...].reshape(bt * t_chunk, hdim)
    logits = jnp.dot(h_all, wgen_ref[...],
                     preferred_element_type=jnp.float32) + bgen_ref[...]
    logits_ref[...] = logits.reshape(bt, t_chunk, vdim).astype(logits_ref.dtype)


def gru_encode(gates_x, h0, w_h_cat, b_hn):
    """gates_x: (T, B_pad, 3H_pad) f32, h0: (B_pad, H_pad) -> h_n (B_pad, H_pad)."""
    t, b_pad, three_h = gates_x.shape
    hdim = h0.shape[-1]
    bt = _batch_tile(b_pad)
    tc = min(16, t)
    t_pad = _round_up(t, tc)
    if t_pad > t:
        gates_x = jnp.pad(gates_x, ((0, t_pad - t), (0, 0), (0, 0)))
    nc = t_pad // tc
    gb = b_pad // bt

    est = (tc * bt * three_h * 4 * 2        # gx block, double-buffered
           + hdim * three_h * 4 * 2         # W_h (budget 2x even if Buffered(1))
           + hdim * 4 * 4                   # b_hn
           + bt * hdim * 4 * 6)             # h0 / h_n blocks / scratch
    kernel = functools.partial(_gru_encoder_kernel, t_real=t, n_chunks=nc)
    return pl.pallas_call(
        kernel,
        out_shape=jax.ShapeDtypeStruct((b_pad, hdim), jnp.float32),
        grid_spec=pltpu.PrefetchScalarGridSpec(
            num_scalar_prefetch=0,
            grid=(gb, nc),
            in_specs=[
                pl.BlockSpec((tc, bt, three_h), lambda ib, c: (c, ib, 0)),
                _const_spec((hdim, three_h), lambda ib, c: (0, 0)),
                _const_spec((1, hdim), lambda ib, c: (0, 0)),
                pl.BlockSpec((bt, hdim), lambda ib, c: (ib, 0)),
            ],
            out_specs=pl.BlockSpec((bt, hdim), lambda ib, c: (ib, 0)),
            scratch_shapes=[pltpu.VMEM((bt, hdim), jnp.float32)],
        ),
        compiler_params=pltpu.CompilerParams(
            dimension_semantics=("parallel", "arbitrary"),
            vmem_limit_bytes=_vmem_limit_bytes(est)),
    )(gates_x, w_h_cat, b_hn, h0)


def gru_decode_generate(gates_x, h0, w_h_cat, b_hn, w_gen, b_gen, *,
                        logits_dtype=jnp.float32):
    """gates_x: (T, B_pad, 3H_pad), h0: (B_pad, H_pad).

    Returns batch-first logits (B_pad, T_pad, V_pad) with T_pad >= T.
    """
    t, b_pad, three_h = gates_x.shape
    hdim = h0.shape[-1]
    v = w_gen.shape[-1]
    bt = _batch_tile(b_pad)
    out_bytes = jnp.dtype(logits_dtype).itemsize

    # Time chunk: multiple of 8 (tile-aligned reshape); shrink if the
    # double-buffered (bt, tc, V) out block would dominate VMEM.
    tc = min(16, _round_up(t, 8))
    while tc > 8 and bt * tc * v * out_bytes * 2 > (16 << 20):
        tc -= 8
    t_pad = _round_up(t, tc)
    if t_pad > t:
        gates_x = jnp.pad(gates_x, ((0, t_pad - t), (0, 0), (0, 0)))
    nc = t_pad // tc
    gb = b_pad // bt

    est = (tc * bt * three_h * 4 * 2        # gx block, double-buffered
           + hdim * three_h * 4 * 2         # W_h
           + hdim * v * 4 * 2               # W_gen (budget 2x even if Buffered(1))
           + v * 4 * 4                      # b_gen / b_hn
           + bt * tc * v * out_bytes * 2    # logits out block, double-buffered
           + bt * hdim * 4 * 4              # h0 block + h scratch
           + bt * tc * hdim * 4)            # h-sequence scratch
    return pl.pallas_call(
        _gru_decoder_kernel,
        out_shape=jax.ShapeDtypeStruct((b_pad, t_pad, v), logits_dtype),
        grid_spec=pltpu.PrefetchScalarGridSpec(
            num_scalar_prefetch=0,
            grid=(gb, nc),
            in_specs=[
                pl.BlockSpec((tc, bt, three_h), lambda ib, c: (c, ib, 0)),
                _const_spec((hdim, three_h), lambda ib, c: (0, 0)),
                _const_spec((1, hdim), lambda ib, c: (0, 0)),
                pl.BlockSpec((bt, hdim), lambda ib, c: (ib, 0)),
                _const_spec((hdim, v), lambda ib, c: (0, 0)),
                _const_spec((1, v), lambda ib, c: (0, 0)),
            ],
            out_specs=pl.BlockSpec((bt, tc, v), lambda ib, c: (ib, c, 0)),
            scratch_shapes=[pltpu.VMEM((bt, hdim), jnp.float32),
                            pltpu.VMEM((bt, tc, hdim), jnp.float32)],
        ),
        compiler_params=pltpu.CompilerParams(
            dimension_semantics=("parallel", "arbitrary"),
            vmem_limit_bytes=_vmem_limit_bytes(est)),
    )(gates_x, w_h_cat, b_hn, h0, w_gen, b_gen)


# ----------------------------------------------------------------------------
# Parameter construction (deterministic, synthetic) with TPU-aligned padding.
# The per-GRU input projection is folded into a precomputed projected
# embedding table emb_proj = emb @ [W_ir|W_iz|W_in] + (b_i + b_h folds), so the
# per-call GRU input is just a gather.  Padded hidden/vocab lanes are zero, so
# results on the real slices are exact.
# ----------------------------------------------------------------------------
def init_params(key, vocab_size, emb_size, hid_size, padding_idx):
    h_pad = _round_up(hid_size, 128)
    v_pad = _round_up(vocab_size, 128)
    ks = jax.random.split(key, 5)
    s = 0.1

    emb = s * jax.random.normal(ks[0], (vocab_size, emb_size), jnp.float32)
    emb = emb.at[padding_idx].set(0.0)   # nn.Embedding(padding_idx=...) semantics

    def make_gru(k0):
        kk = jax.random.split(k0, 12)
        wi = [s * jax.random.normal(kk[i], (emb_size, hid_size), jnp.float32)
              for i in range(3)]                          # W_ir, W_iz, W_in
        wh = [s * jax.random.normal(kk[3 + i], (hid_size, hid_size), jnp.float32)
              for i in range(3)]                          # W_hr, W_hz, W_hn
        bi = [s * jax.random.normal(kk[6 + i], (hid_size,), jnp.float32)
              for i in range(3)]                          # b_ir, b_iz, b_in
        bh = [s * jax.random.normal(kk[9 + i], (hid_size,), jnp.float32)
              for i in range(3)]                          # b_hr, b_hz, b_hn

        w_i = jnp.zeros((emb_size, 3 * h_pad), jnp.float32)
        w_h = jnp.zeros((h_pad, 3 * h_pad), jnp.float32)
        b_i = jnp.zeros((1, 3 * h_pad), jnp.float32)
        for g in range(3):
            w_i = w_i.at[:, g * h_pad:g * h_pad + hid_size].set(wi[g])
            w_h = w_h.at[:hid_size, g * h_pad:g * h_pad + hid_size].set(wh[g])
        # Fold b_ir+b_hr, b_iz+b_hz and b_in into the input-side projection.
        b_i = b_i.at[0, 0 * h_pad:0 * h_pad + hid_size].set(bi[0] + bh[0])
        b_i = b_i.at[0, 1 * h_pad:1 * h_pad + hid_size].set(bi[1] + bh[1])
        b_i = b_i.at[0, 2 * h_pad:2 * h_pad + hid_size].set(bi[2])
        b_hn = jnp.zeros((1, h_pad), jnp.float32).at[0, :hid_size].set(bh[2])
        # Parameter-sized precompute: projected embedding table (vocab, 3H_pad).
        emb_proj = emb @ w_i + b_i
        packed = dict(emb_proj=emb_proj, w_h=w_h, b_hn=b_hn)
        raw = dict(wi=wi, wh=wh, bi=bi, bh=bh)
        return packed, raw

    enc, enc_raw = make_gru(ks[1])
    dec, dec_raw = make_gru(ks[2])

    gen_w = s * jax.random.normal(ks[3], (hid_size, vocab_size), jnp.float32)
    gen_b = s * jax.random.normal(ks[4], (vocab_size,), jnp.float32)
    gen_w_pad = (jnp.zeros((h_pad, v_pad), jnp.float32)
                 .at[:hid_size, :vocab_size].set(gen_w))
    gen_b_pad = jnp.zeros((1, v_pad), jnp.float32).at[0, :vocab_size].set(gen_b)

    return dict(
        vocab_size=vocab_size, emb_size=emb_size, hid_size=hid_size,
        h_pad=h_pad, v_pad=v_pad,
        enc=enc, dec=dec, gen_w=gen_w_pad, gen_b=gen_b_pad,
        raw=dict(emb=emb, enc=enc_raw, dec=dec_raw, gen_w=gen_w, gen_b=gen_b),
    )


# ----------------------------------------------------------------------------
# Full AutoEncoder forward
# ----------------------------------------------------------------------------
def autoencoder_forward(params, x_tokens, dec_tokens, *,
                        logits_dtype=jnp.float32):
    """x_tokens, dec_tokens: int32 (B, T). Returns logits (B, T_dec, vocab).

    Set logits_dtype=jnp.bfloat16 to halve the (B,T,V) HBM writeback if the
    consumer does not need f32.
    """
    b, _ = x_tokens.shape
    _, t_dec = dec_tokens.shape
    h_pad = params["h_pad"]
    vocab = params["vocab_size"]
    b_pad = _round_up(b, 8)

    def pad_batch(tok):
        return tok if b_pad == b else jnp.pad(tok, ((0, b_pad - b), (0, 0)))

    xt = pad_batch(x_tokens)
    dt = pad_batch(dec_tokens)

    # GRU inputs: gather of the precomputed projected-embedding tables,
    # directly in time-major layout (transpose happens on tiny int tokens).
    gx_enc = jnp.take(params["enc"]["emb_proj"], xt.T, axis=0)  # (T_enc, B, 3H)
    gx_dec = jnp.take(params["dec"]["emb_proj"], dt.T, axis=0)  # (T_dec, B, 3H)

    h0 = jnp.zeros((b_pad, h_pad), jnp.float32)
    h_n = gru_encode(gx_enc, h0, params["enc"]["w_h"], params["enc"]["b_hn"])
    logits_pad = gru_decode_generate(gx_dec, h_n,
                                     params["dec"]["w_h"], params["dec"]["b_hn"],
                                     params["gen_w"], params["gen_b"],
                                     logits_dtype=logits_dtype)
    return logits_pad[:b, :t_dec, :vocab]                  # (B, T_dec, vocab)


# ----------------------------------------------------------------------------
# Pure-JAX reference (unpadded) for a numerical sanity check
# ----------------------------------------------------------------------------
def reference_forward(params, x_tokens, dec_tokens):
    raw = params["raw"]
    emb = raw["emb"]
    hid = params["hid_size"]

    def gru(p, xs, h0):
        wi, wh, bi, bh = p["wi"], p["wh"], p["bi"], p["bh"]

        def step(h, x):
            r = jax.nn.sigmoid(x @ wi[0] + bi[0] + h @ wh[0] + bh[0])
            z = jax.nn.sigmoid(x @ wi[1] + bi[1] + h @ wh[1] + bh[1])
            n = jnp.tanh(x @ wi[2] + bi[2] + r * (h @ wh[2] + bh[2]))
            h_new = n + z * (h - n)
            return h_new, h_new

        h_last, seq = jax.lax.scan(step, h0, xs)
        return seq, h_last

    b = x_tokens.shape[0]
    emb_x = jnp.take(emb, x_tokens.T, axis=0)              # (T, B, E)
    emb_d = jnp.take(emb, dec_tokens.T, axis=0)
    h0 = jnp.zeros((b, hid), jnp.float32)
    _, h_n = gru(raw["enc"], emb_x, h0)
    seq, _ = gru(raw["dec"], emb_d, h_n)                   # (T, B, H)
    logits = seq @ raw["gen_w"] + raw["gen_b"]             # (T, B, V)
    return jnp.transpose(logits, (1, 0, 2))


if __name__ == "__main__":
    vocab_size, emb_size, hid_size = 64, 32, 32
    padding_idx = 0
    B, T_enc, T_dec = 2, 8, 8
    # latent_size / rnn_size / rnn_num_layers / cnn_type are unused in forward().

    key = jax.random.PRNGKey(0)
    pkey, xkey, dkey = jax.random.split(key, 3)
    params = init_params(pkey, vocab_size, emb_size, hid_size, padding_idx)

    x = jax.random.randint(xkey, (B, T_enc), 0, vocab_size, dtype=jnp.int32)
    decoder_input = jax.random.randint(dkey, (B, T_dec), 0, vocab_size,
                                       dtype=jnp.int32)

    logits = autoencoder_forward(params, x, decoder_input)
    jax.block_until_ready(logits)
    assert logits.shape == (B, T_dec, vocab_size), logits.shape

    # Numerical sanity check against a pure-JAX (unpadded) reference.
    ref = reference_forward(params, x, decoder_input)
    err = float(jnp.max(jnp.abs(logits - ref)))
    assert err < 1e-3, f"max abs error {err}"

    print("KERNEL_OK")
</pallas_src>

<mosaic_0001>
module attributes {stable_mosaic.version = 11 : i64} {
  func.func @_gru_encoder_kernel(%arg0: i32, %arg1: i32, %arg2: memref<8x8x384xf32, #tpu.memory_space<vmem>>, %arg3: memref<128x384xf32, #tpu.memory_space<vmem>>, %arg4: memref<1x128xf32, #tpu.memory_space<vmem>>, %arg5: memref<8x128xf32, #tpu.memory_space<vmem>>, %arg6: memref<8x128xf32, #tpu.memory_space<vmem>>, %arg7: memref<8x128xf32, #tpu.memory_space<vmem>>) attributes {dimension_semantics = [#tpu.dimension_semantics<parallel>, #tpu.dimension_semantics<arbitrary>], iteration_bounds = array<i64: 1, 1>, scalar_prefetch = 0 : i64, scratch_operands = 1 : i64, tpu.core_type = #tpu.core_type<tc>, window_params = [{transform_indices = @transform_0, window_bounds = array<i64: 8, 8, 384>}, {pipeline_mode = #tpu.pipeline_mode<synchronous>, transform_indices = @transform_1, window_bounds = array<i64: 128, 384>}, {pipeline_mode = #tpu.pipeline_mode<synchronous>, transform_indices = @transform_2, window_bounds = array<i64: 1, 128>}, {transform_indices = @transform_3, window_bounds = array<i64: 8, 128>}, {transform_indices = @transform_4, window_bounds = array<i64: 8, 128>}]} {
    %c0_i32 = arith.constant 0 : i32
    %0 = arith.cmpi eq, %arg1, %c0_i32 : i32
    %1 = arith.extui %0 : i1 to i32
    %c0_i32_0 = arith.constant 0 : i32
    %2 = arith.cmpi ne, %1, %c0_i32_0 : i32
    scf.if %2 {
      %c0_50 = arith.constant 0 : index
      %c0_51 = arith.constant 0 : index
      %236 = vector.load %arg5[%c0_50, %c0_51] : memref<8x128xf32, #tpu.memory_space<vmem>>, vector<8x128xf32>
      %c0_52 = arith.constant 0 : index
      %c0_53 = arith.constant 0 : index
      %237 = vector.load %arg7[%c0_52, %c0_53] : memref<8x128xf32, #tpu.memory_space<vmem>>, vector<8x128xf32>
      tpu.vector_store %arg7[%c0_52, %c0_53], %236 {strides = array<i32>} : memref<8x128xf32, #tpu.memory_space<vmem>>, vector<8x128xf32>,
    } else {
    }
    %c0 = arith.constant 0 : index
    %c0_1 = arith.constant 0 : index
    %3 = vector.load %arg7[%c0, %c0_1] : memref<8x128xf32, #tpu.memory_space<vmem>>, vector<8x128xf32>
    %c0_2 = arith.constant 0 : index
    %c0_3 = arith.constant 0 : index
    %4 = vector.load %arg3[%c0_2, %c0_3] : memref<128x384xf32, #tpu.memory_space<vmem>>, vector<128x384xf32>
    %c0_4 = arith.constant 0 : index
    %c0_5 = arith.constant 0 : index
    %5 = vector.load %arg4[%c0_4, %c0_5] : memref<1x128xf32, #tpu.memory_space<vmem>>, vector<1x128xf32>
    %6 = vector.shape_cast %5 : vector<1x128xf32> to vector<1x128xf32>
    %7 = vector.broadcast %6 : vector<1x128xf32> to vector<8x128xf32>
    %c0_6 = arith.constant 0 : index
    %c0_7 = arith.constant 0 : index
    %c0_8 = arith.constant 0 : index
    %8 = vector.load %arg2[%c0_6, %c0_7, %c0_8] : memref<8x8x384xf32, #tpu.memory_space<vmem>>, vector<1x8x384xf32>
    %9 = vector.shape_cast %8 : vector<1x8x384xf32> to vector<8x384xf32>
    %cst = arith.constant dense<0.000000e+00> : vector<8x384xf32>
    %10 = tpu.matmul %3, %4, %cst {dimension_numbers = #tpu.dot_dimension_numbers<[1], [0], [0], [1], [0, 0, 1, 1], [], []>} : vector<8x128xf32>, vector<128x384xf32>, vector<8x384xf32> -> vector<8x384xf32>
    %11 = vector.extract_strided_slice %9 {offsets = [0, 0], sizes = [8, 128], strides = [1, 1]} : vector<8x384xf32> to vector<8x128xf32>
    %12 = vector.extract_strided_slice %10 {offsets = [0, 0], sizes = [8, 128], strides = [1, 1]} : vector<8x384xf32> to vector<8x128xf32>
    %13 = arith.addf %11, %12 : vector<8x128xf32>
    %14 = arith.negf %13 : vector<8x128xf32>
    %15 = math.exp %14 : vector<8x128xf32>
    %cst_9 = arith.constant 1.000000e+00 : f32
    %16 = vector.broadcast %cst_9 : f32 to vector<8x128xf32>
    %17 = arith.addf %16, %15 : vector<8x128xf32>
    %18 = arith.divf %16, %17 : vector<8x128xf32>
    %19 = vector.extract_strided_slice %9 {offsets = [0, 128], sizes = [8, 128], strides = [1, 1]} : vector<8x384xf32> to vector<8x128xf32>
    %20 = vector.extract_strided_slice %10 {offsets = [0, 128], sizes = [8, 128], strides = [1, 1]} : vector<8x384xf32> to vector<8x128xf32>
    %21 = arith.addf %19, %20 : vector<8x128xf32>
    %22 = arith.negf %21 : vector<8x128xf32>
    %23 = math.exp %22 : vector<8x128xf32>
    %cst_10 = arith.constant 1.000000e+00 : f32
    %24 = vector.broadcast %cst_10 : f32 to vector<8x128xf32>
    %25 = arith.addf %24, %23 : vector<8x128xf32>
    %26 = arith.divf %24, %25 : vector<8x128xf32>
    %27 = vector.extract_strided_slice %9 {offsets = [0, 256], sizes = [8, 128], strides = [1, 1]} : vector<8x384xf32> to vector<8x128xf32>
    %28 = vector.extract_strided_slice %10 {offsets = [0, 256], sizes = [8, 128], strides = [1, 1]} : vector<8x384xf32> to vector<8x128xf32>
    %29 = arith.addf %28, %7 : vector<8x128xf32>
    %30 = arith.mulf %18, %29 : vector<8x128xf32>
    %31 = arith.addf %27, %30 : vector<8x128xf32>
    %32 = math.tanh %31 : vector<8x128xf32>
    %33 = arith.subf %3, %32 : vector<8x128xf32>
    %34 = arith.mulf %26, %33 : vector<8x128xf32>
    %35 = arith.addf %32, %34 : vector<8x128xf32>
    %c1 = arith.constant 1 : index
    %c0_11 = arith.constant 0 : index
    %c0_12 = arith.constant 0 : index
    %36 = vector.load %arg2[%c1, %c0_11, %c0_12] : memref<8x8x384xf32, #tpu.memory_space<vmem>>, vector<1x8x384xf32>
    %37 = vector.shape_cast %36 : vector<1x8x384xf32> to vector<8x384xf32>
    %cst_13 = arith.constant dense<0.000000e+00> : vector<8x384xf32>
    %38 = tpu.matmul %35, %4, %cst_13 {dimension_numbers = #tpu.dot_dimension_numbers<[1], [0], [0], [1], [0, 0, 1, 1], [], []>} : vector<8x128xf32>, vector<128x384xf32>, vector<8x384xf32> -> vector<8x384xf32>
    %39 = vector.extract_strided_slice %37 {offsets = [0, 0], sizes = [8, 128], strides = [1, 1]} : vector<8x384xf32> to vector<8x128xf32>
    %40 = vector.extract_strided_slice %38 {offsets = [0, 0], sizes = [8, 128], strides = [1, 1]} : vector<8x384xf32> to vector<8x128xf32>
    %41 = arith.addf %39, %40 : vector<8x128xf32>
    %42 = arith.negf %41 : vector<8x128xf32>
    %43 = math.exp %42 : vector<8x128xf32>
    %cst_14 = arith.constant 1.000000e+00 : f32
    %44 = vector.broadcast %cst_14 : f32 to vector<8x128xf32>
    %45 = arith.addf %44, %43 : vector<8x128xf32>
    %46 = arith.divf %44, %45 : vector<8x128xf32>
    %47 = vector.extract_strided_slice %37 {offsets = [0, 128], sizes = [8, 128], strides = [1, 1]} : vector<8x384xf32> to vector<8x128xf32>
    %48 = vector.extract_strided_slice %38 {offsets = [0, 128], sizes = [8, 128], strides = [1, 1]} : vector<8x384xf32> to vector<8x128xf32>
    %49 = arith.addf %47, %48 : vector<8x128xf32>
    %50 = arith.negf %49 : vector<8x128xf32>
    %51 = math.exp %50 : vector<8x128xf32>
    %cst_15 = arith.constant 1.000000e+00 : f32
    %52 = vector.broadcast %cst_15 : f32 to vector<8x128xf32>
    %53 = arith.addf %52, %51 : vector<8x128xf32>
    %54 = arith.divf %52, %53 : vector<8x128xf32>
    %55 = vector.extract_strided_slice %37 {offsets = [0, 256], sizes = [8, 128], strides = [1, 1]} : vector<8x384xf32> to vector<8x128xf32>
    %56 = vector.extract_strided_slice %38 {offsets = [0, 256], sizes = [8, 128], strides = [1, 1]} : vector<8x384xf32> to vector<8x128xf32>
    %57 = arith.addf %56, %7 : vector<8x128xf32>
    %58 = arith.mulf %46, %57 : vector<8x128xf32>
    %59 = arith.addf %55, %58 : vector<8x128xf32>
    %60 = math.tanh %59 : vector<8x128xf32>
    %61 = arith.subf %35, %60 : vector<8x128xf32>
    %62 = arith.mulf %54, %61 : vector<8x128xf32>
    %63 = arith.addf %60, %62 : vector<8x128xf32>
    %c2 = arith.constant 2 : index
    %c0_16 = arith.constant 0 : index
    %c0_17 = arith.constant 0 : index
    %64 = vector.load %arg2[%c2, %c0_16, %c0_17] : memref<8x8x384xf32, #tpu.memory_space<vmem>>, vector<1x8x384xf32>
    %65 = vector.shape_cast %64 : vector<1x8x384xf32> to vector<8x384xf32>
    %cst_18 = arith.constant dense<0.000000e+00> : vector<8x384xf32>
    %66 = tpu.matmul %63, %4, %cst_18 {dimension_numbers = #tpu.dot_dimension_numbers<[1], [0], [0], [1], [0, 0, 1, 1], [], []>} : vector<8x128xf32>, vector<128x384xf32>, vector<8x384xf32> -> vector<8x384xf32>
    %67 = vector.extract_strided_slice %65 {offsets = [0, 0], sizes = [8, 128], strides = [1, 1]} : vector<8x384xf32> to vector<8x128xf32>
    %68 = vector.extract_strided_slice %66 {offsets = [0, 0], sizes = [8, 128], strides = [1, 1]} : vector<8x384xf32> to vector<8x128xf32>
    %69 = arith.addf %67, %68 : vector<8x128xf32>
    %70 = arith.negf %69 : vector<8x128xf32>
    %71 = math.exp %70 : vector<8x128xf32>
    %cst_19 = arith.constant 1.000000e+00 : f32
    %72 = vector.broadcast %cst_19 : f32 to vector<8x128xf32>
    %73 = arith.addf %72, %71 : vector<8x128xf32>
    %74 = arith.divf %72, %73 : vector<8x128xf32>
    %75 = vector.extract_strided_slice %65 {offsets = [0, 128], sizes = [8, 128], strides = [1, 1]} : vector<8x384xf32> to vector<8x128xf32>
    %76 = vector.extract_strided_slice %66 {offsets = [0, 128], sizes = [8, 128], strides = [1, 1]} : vector<8x384xf32> to vector<8x128xf32>
    %77 = arith.addf %75, %76 : vector<8x128xf32>
    %78 = arith.negf %77 : vector<8x128xf32>
    %79 = math.exp %78 : vector<8x128xf32>
    %cst_20 = arith.constant 1.000000e+00 : f32
    %80 = vector.broadcast %cst_20 : f32 to vector<8x128xf32>
    %81 = arith.addf %80, %79 : vector<8x128xf32>
    %82 = arith.divf %80, %81 : vector<8x128xf32>
    %83 = vector.extract_strided_slice %65 {offsets = [0, 256], sizes = [8, 128], strides = [1, 1]} : vector<8x384xf32> to vector<8x128xf32>
    %84 = vector.extract_strided_slice %66 {offsets = [0, 256], sizes = [8, 128], strides = [1, 1]} : vector<8x384xf32> to vector<8x128xf32>
    %85 = arith.addf %84, %7 : vector<8x128xf32>
    %86 = arith.mulf %74, %85 : vector<8x128xf32>
    %87 = arith.addf %83, %86 : vector<8x128xf32>
    %88 = math.tanh %87 : vector<8x128xf32>
    %89 = arith.subf %63, %88 : vector<8x128xf32>
    %90 = arith.mulf %82, %89 : vector<8x128xf32>
    %91 = arith.addf %88, %90 : vector<8x128xf32>
    %c3 = arith.constant 3 : index
    %c0_21 = arith.constant 0 : index
    %c0_22 = arith.constant 0 : index
    %92 = vector.load %arg2[%c3, %c0_21, %c0_22] : memref<8x8x384xf32, #tpu.memory_space<vmem>>, vector<1x8x384xf32>
    %93 = vector.shape_cast %92 : vector<1x8x384xf32> to vector<8x384xf32>
    %cst_23 = arith.constant dense<0.000000e+00> : vector<8x384xf32>
    %94 = tpu.matmul %91, %4, %cst_23 {dimension_numbers = #tpu.dot_dimension_numbers<[1], [0], [0], [1], [0, 0, 1, 1], [], []>} : vector<8x128xf32>, vector<128x384xf32>, vector<8x384xf32> -> vector<8x384xf32>
    %95 = vector.extract_strided_slice %93 {offsets = [0, 0], sizes = [8, 128], strides = [1, 1]} : vector<8x384xf32> to vector<8x128xf32>
    %96 = vector.extract_strided_slice %94 {offsets = [0, 0], sizes = [8, 128], strides = [1, 1]} : vector<8x384xf32> to vector<8x128xf32>
    %97 = arith.addf %95, %96 : vector<8x128xf32>
    %98 = arith.negf %97 : vector<8x128xf32>
    %99 = math.exp %98 : vector<8x128xf32>
    %cst_24 = arith.constant 1.000000e+00 : f32
    %100 = vector.broadcast %cst_24 : f32 to vector<8x128xf32>
    %101 = arith.addf %100, %99 : vector<8x128xf32>
    %102 = arith.divf %100, %101 : vector<8x128xf32>
    %103 = vector.extract_strided_slice %93 {offsets = [0, 128], sizes = [8, 128], strides = [1, 1]} : vector<8x384xf32> to vector<8x128xf32>
    %104 = vector.extract_strided_slice %94 {offsets = [0, 128], sizes = [8, 128], strides = [1, 1]} : vector<8x384xf32> to vector<8x128xf32>
    %105 = arith.addf %103, %104 : vector<8x128xf32>
    %106 = arith.negf %105 : vector<8x128xf32>
    %107 = math.exp %106 : vector<8x128xf32>
    %cst_25 = arith.constant 1.000000e+00 : f32
    %108 = vector.broadcast %cst_25 : f32 to vector<8x128xf32>
    %109 = arith.addf %108, %107 : vector<8x128xf32>
    %110 = arith.divf %108, %109 : vector<8x128xf32>
    %111 = vector.extract_strided_slice %93 {offsets = [0, 256], sizes = [8, 128], strides = [1, 1]} : vector<8x384xf32> to vector<8x128xf32>
    %112 = vector.extract_strided_slice %94 {offsets = [0, 256], sizes = [8, 128], strides = [1, 1]} : vector<8x384xf32> to vector<8x128xf32>
    %113 = arith.addf %112, %7 : vector<8x128xf32>
    %114 = arith.mulf %102, %113 : vector<8x128xf32>
    %115 = arith.addf %111, %114 : vector<8x128xf32>
    %116 = math.tanh %115 : vector<8x128xf32>
    %117 = arith.subf %91, %116 : vector<8x128xf32>
    %118 = arith.mulf %110, %117 : vector<8x128xf32>
    %119 = arith.addf %116, %118 : vector<8x128xf32>
    %c4 = arith.constant 4 : index
    %c0_26 = arith.constant 0 : index
    %c0_27 = arith.constant 0 : index
    %120 = vector.load %arg2[%c4, %c0_26, %c0_27] : memref<8x8x384xf32, #tpu.memory_space<vmem>>, vector<1x8x384xf32>
    %121 = vector.shape_cast %120 : vector<1x8x384xf32> to vector<8x384xf32>
    %cst_28 = arith.constant dense<0.000000e+00> : vector<8x384xf32>
    %122 = tpu.matmul %119, %4, %cst_28 {dimension_numbers = #tpu.dot_dimension_numbers<[1], [0], [0], [1], [0, 0, 1, 1], [], []>} : vector<8x128xf32>, vector<128x384xf32>, vector<8x384xf32> -> vector<8x384xf32>
    %123 = vector.extract_strided_slice %121 {offsets = [0, 0], sizes = [8, 128], strides = [1, 1]} : vector<8x384xf32> to vector<8x128xf32>
    %124 = vector.extract_strided_slice %122 {offsets = [0, 0], sizes = [8, 128], strides = [1, 1]} : vector<8x384xf32> to vector<8x128xf32>
    %125 = arith.addf %123, %124 : vector<8x128xf32>
    %126 = arith.negf %125 : vector<8x128xf32>
    %127 = math.exp %126 : vector<8x128xf32>
    %cst_29 = arith.constant 1.000000e+00 : f32
    %128 = vector.broadcast %cst_29 : f32 to vector<8x128xf32>
    %129 = arith.addf %128, %127 : vector<8x128xf32>
    %130 = arith.divf %128, %129 : vector<8x128xf32>
    %131 = vector.extract_strided_slice %121 {offsets = [0, 128], sizes = [8, 128], strides = [1, 1]} : vector<8x384xf32> to vector<8x128xf32>
    %132 = vector.extract_strided_slice %122 {offsets = [0, 128], sizes = [8, 128], strides = [1, 1]} : vector<8x384xf32> to vector<8x128xf32>
    %133 = arith.addf %131, %132 : vector<8x128xf32>
    %134 = arith.negf %133 : vector<8x128xf32>
    %135 = math.exp %134 : vector<8x128xf32>
    %cst_30 = arith.constant 1.000000e+00 : f32
    %136 = vector.broadcast %cst_30 : f32 to vector<8x128xf32>
    %137 = arith.addf %136, %135 : vector<8x128xf32>
    %138 = arith.divf %136, %137 : vector<8x128xf32>
    %139 = vector.extract_strided_slice %121 {offsets = [0, 256], sizes = [8, 128], strides = [1, 1]} : vector<8x384xf32> to vector<8x128xf32>
    %140 = vector.extract_strided_slice %122 {offsets = [0, 256], sizes = [8, 128], strides = [1, 1]} : vector<8x384xf32> to vector<8x128xf32>
    %141 = arith.addf %140, %7 : vector<8x128xf32>
    %142 = arith.mulf %130, %141 : vector<8x128xf32>
    %143 = arith.addf %139, %142 : vector<8x128xf32>
    %144 = math.tanh %143 : vector<8x128xf32>
    %145 = arith.subf %119, %144 : vector<8x128xf32>
    %146 = arith.mulf %138, %145 : vector<8x128xf32>
    %147 = arith.addf %144, %146 : vector<8x128xf32>
    %c5 = arith.constant 5 : index
    %c0_31 = arith.constant 0 : index
    %c0_32 = arith.constant 0 : index
    %148 = vector.load %arg2[%c5, %c0_31, %c0_32] : memref<8x8x384xf32, #tpu.memory_space<vmem>>, vector<1x8x384xf32>
    %149 = vector.shape_cast %148 : vector<1x8x384xf32> to vector<8x384xf32>
    %cst_33 = arith.constant dense<0.000000e+00> : vector<8x384xf32>
    %150 = tpu.matmul %147, %4, %cst_33 {dimension_numbers = #tpu.dot_dimension_numbers<[1], [0], [0], [1], [0, 0, 1, 1], [], []>} : vector<8x128xf32>, vector<128x384xf32>, vector<8x384xf32> -> vector<8x384xf32>
    %151 = vector.extract_strided_slice %149 {offsets = [0, 0], sizes = [8, 128], strides = [1, 1]} : vector<8x384xf32> to vector<8x128xf32>
    %152 = vector.extract_strided_slice %150 {offsets = [0, 0], sizes = [8, 128], strides = [1, 1]} : vector<8x384xf32> to vector<8x128xf32>
    %153 = arith.addf %151, %152 : vector<8x128xf32>
    %154 = arith.negf %153 : vector<8x128xf32>
    %155 = math.exp %154 : vector<8x128xf32>
    %cst_34 = arith.constant 1.000000e+00 : f32
    %156 = vector.broadcast %cst_34 : f32 to vector<8x128xf32>
    %157 = arith.addf %156, %155 : vector<8x128xf32>
    %158 = arith.divf %156, %157 : vector<8x128xf32>
    %159 = vector.extract_strided_slice %149 {offsets = [0, 128], sizes = [8, 128], strides = [1, 1]} : vector<8x384xf32> to vector<8x128xf32>
    %160 = vector.extract_strided_slice %150 {offsets = [0, 128], sizes = [8, 128], strides = [1, 1]} : vector<8x384xf32> to vector<8x128xf32>
    %161 = arith.addf %159, %160 : vector<8x128xf32>
    %162 = arith.negf %161 : vector<8x128xf32>
    %163 = math.exp %162 : vector<8x128xf32>
    %cst_35 = arith.constant 1.000000e+00 : f32
    %164 = vector.broadcast %cst_35 : f32 to vector<8x128xf32>
    %165 = arith.addf %164, %163 : vector<8x128xf32>
    %166 = arith.divf %164, %165 : vector<8x128xf32>
    %167 = vector.extract_strided_slice %149 {offsets = [0, 256], sizes = [8, 128], strides = [1, 1]} : vector<8x384xf32> to vector<8x128xf32>
    %168 = vector.extract_strided_slice %150 {offsets = [0, 256], sizes = [8, 128], strides = [1, 1]} : vector<8x384xf32> to vector<8x128xf32>
    %169 = arith.addf %168, %7 : vector<8x128xf32>
    %170 = arith.mulf %158, %169 : vector<8x128xf32>
    %171 = arith.addf %167, %170 : vector<8x128xf32>
    %172 = math.tanh %171 : vector<8x128xf32>
    %173 = arith.subf %147, %172 : vector<8x128xf32>
    %174 = arith.mulf %166, %173 : vector<8x128xf32>
    %175 = arith.addf %172, %174 : vector<8x128xf32>
    %c6 = arith.constant 6 : index
    %c0_36 = arith.constant 0 : index
    %c0_37 = arith.constant 0 : index
    %176 = vector.load %arg2[%c6, %c0_36, %c0_37] : memref<8x8x384xf32, #tpu.memory_space<vmem>>, vector<1x8x384xf32>
    %177 = vector.shape_cast %176 : vector<1x8x384xf32> to vector<8x384xf32>
    %cst_38 = arith.constant dense<0.000000e+00> : vector<8x384xf32>
    %178 = tpu.matmul %175, %4, %cst_38 {dimension_numbers = #tpu.dot_dimension_numbers<[1], [0], [0], [1], [0, 0, 1, 1], [], []>} : vector<8x128xf32>, vector<128x384xf32>, vector<8x384xf32> -> vector<8x384xf32>
    %179 = vector.extract_strided_slice %177 {offsets = [0, 0], sizes = [8, 128], strides = [1, 1]} : vector<8x384xf32> to vector<8x128xf32>
    %180 = vector.extract_strided_slice %178 {offsets = [0, 0], sizes = [8, 128], strides = [1, 1]} : vector<8x384xf32> to vector<8x128xf32>
    %181 = arith.addf %179, %180 : vector<8x128xf32>
    %182 = arith.negf %181 : vector<8x128xf32>
    %183 = math.exp %182 : vector<8x128xf32>
    %cst_39 = arith.constant 1.000000e+00 : f32
    %184 = vector.broadcast %cst_39 : f32 to vector<8x128xf32>
    %185 = arith.addf %184, %183 : vector<8x128xf32>
    %186 = arith.divf %184, %185 : vector<8x128xf32>
    %187 = vector.extract_strided_slice %177 {offsets = [0, 128], sizes = [8, 128], strides = [1, 1]} : vector<8x384xf32> to vector<8x128xf32>
    %188 = vector.extract_strided_slice %178 {offsets = [0, 128], sizes = [8, 128], strides = [1, 1]} : vector<8x384xf32> to vector<8x128xf32>
    %189 = arith.addf %187, %188 : vector<8x128xf32>
    %190 = arith.negf %189 : vector<8x128xf32>
    %191 = math.exp %190 : vector<8x128xf32>
    %cst_40 = arith.constant 1.000000e+00 : f32
    %192 = vector.broadcast %cst_40 : f32 to vector<8x128xf32>
    %193 = arith.addf %192, %191 : vector<8x128xf32>
    %194 = arith.divf %192, %193 : vector<8x128xf32>
    %195 = vector.extract_strided_slice %177 {offsets = [0, 256], sizes = [8, 128], strides = [1, 1]} : vector<8x384xf32> to vector<8x128xf32>
    %196 = vector.extract_strided_slice %178 {offsets = [0, 256], sizes = [8, 128], strides = [1, 1]} : vector<8x384xf32> to vector<8x128xf32>
    %197 = arith.addf %196, %7 : vector<8x128xf32>
    %198 = arith.mulf %186, %197 : vector<8x128xf32>
    %199 = arith.addf %195, %198 : vector<8x128xf32>
    %200 = math.tanh %199 : vector<8x128xf32>
    %201 = arith.subf %175, %200 : vector<8x128xf32>
    %202 = arith.mulf %194, %201 : vector<8x128xf32>
    %203 = arith.addf %200, %202 : vector<8x128xf32>
    %c7 = arith.constant 7 : index
    %c0_41 = arith.constant 0 : index
    %c0_42 = arith.constant 0 : index
    %204 = vector.load %arg2[%c7, %c0_41, %c0_42] : memref<8x8x384xf32, #tpu.memory_space<vmem>>, vector<1x8x384xf32>
    %205 = vector.shape_cast %204 : vector<1x8x384xf32> to vector<8x384xf32>
    %cst_43 = arith.constant dense<0.000000e+00> : vector<8x384xf32>
    %206 = tpu.matmul %203, %4, %cst_43 {dimension_numbers = #tpu.dot_dimension_numbers<[1], [0], [0], [1], [0, 0, 1, 1], [], []>} : vector<8x128xf32>, vector<128x384xf32>, vector<8x384xf32> -> vector<8x384xf32>
    %207 = vector.extract_strided_slice %205 {offsets = [0, 0], sizes = [8, 128], strides = [1, 1]} : vector<8x384xf32> to vector<8x128xf32>
    %208 = vector.extract_strided_slice %206 {offsets = [0, 0], sizes = [8, 128], strides = [1, 1]} : vector<8x384xf32> to vector<8x128xf32>
    %209 = arith.addf %207, %208 : vector<8x128xf32>
    %210 = arith.negf %209 : vector<8x128xf32>
    %211 = math.exp %210 : vector<8x128xf32>
    %cst_44 = arith.constant 1.000000e+00 : f32
    %212 = vector.broadcast %cst_44 : f32 to vector<8x128xf32>
    %213 = arith.addf %212, %211 : vector<8x128xf32>
    %214 = arith.divf %212, %213 : vector<8x128xf32>
    %215 = vector.extract_strided_slice %205 {offsets = [0, 128], sizes = [8, 128], strides = [1, 1]} : vector<8x384xf32> to vector<8x128xf32>
    %216 = vector.extract_strided_slice %206 {offsets = [0, 128], sizes = [8, 128], strides = [1, 1]} : vector<8x384xf32> to vector<8x128xf32>
    %217 = arith.addf %215, %216 : vector<8x128xf32>
    %218 = arith.negf %217 : vector<8x128xf32>
    %219 = math.exp %218 : vector<8x128xf32>
    %cst_45 = arith.constant 1.000000e+00 : f32
    %220 = vector.broadcast %cst_45 : f32 to vector<8x128xf32>
    %221 = arith.addf %220, %219 : vector<8x128xf32>
    %222 = arith.divf %220, %221 : vector<8x128xf32>
    %223 = vector.extract_strided_slice %205 {offsets = [0, 256], sizes = [8, 128], strides = [1, 1]} : vector<8x384xf32> to vector<8x128xf32>
    %224 = vector.extract_strided_slice %206 {offsets = [0, 256], sizes = [8, 128], strides = [1, 1]} : vector<8x384xf32> to vector<8x128xf32>
    %225 = arith.addf %224, %7 : vector<8x128xf32>
    %226 = arith.mulf %214, %225 : vector<8x128xf32>
    %227 = arith.addf %223, %226 : vector<8x128xf32>
    %228 = math.tanh %227 : vector<8x128xf32>
    %229 = arith.subf %203, %228 : vector<8x128xf32>
    %230 = arith.mulf %222, %229 : vector<8x128xf32>
    %231 = arith.addf %228, %230 : vector<8x128xf32>
    %c0_46 = arith.constant 0 : index
    %c0_47 = arith.constant 0 : index
    %232 = vector.load %arg7[%c0_46, %c0_47] : memref<8x128xf32, #tpu.memory_space<vmem>>, vector<8x128xf32>
    tpu.vector_store %arg7[%c0_46, %c0_47], %231 {strides = array<i32>} : memref<8x128xf32, #tpu.memory_space<vmem>>, vector<8x128xf32>,
    %c0_i32_48 = arith.constant 0 : i32
    %233 = arith.cmpi eq, %arg1, %c0_i32_48 : i32
    %234 = arith.extui %233 : i1 to i32
    %c0_i32_49 = arith.constant 0 : i32
    %235 = arith.cmpi ne, %234, %c0_i32_49 : i32
    scf.if %235 {
      %c0_50 = arith.constant 0 : index
      %c0_51 = arith.constant 0 : index
      %236 = vector.load %arg6[%c0_50, %c0_51] : memref<8x128xf32, #tpu.memory_space<vmem>>, vector<8x128xf32>
      tpu.vector_store %arg6[%c0_50, %c0_51], %231 {strides = array<i32>} : memref<8x128xf32, #tpu.memory_space<vmem>>, vector<8x128xf32>,
    } else {
    }
    return
  }
  func.func @transform_0(%arg0: i32, %arg1: i32) -> (i32, i32, i32) {
    %c0_i32 = arith.constant 0 : i32
    %c0_i32_0 = arith.constant 0 : i32
    return %arg1, %arg0, %c0_i32 : i32, i32, i32
  }
  func.func @transform_1(%arg0: i32, %arg1: i32) -> (i32, i32) {
    %c0_i32 = arith.constant 0 : i32
    %c0_i32_0 = arith.constant 0 : i32
    %c0_i32_1 = arith.constant 0 : i32
    return %c0_i32, %c0_i32_0 : i32, i32
  }
  func.func @transform_2(%arg0: i32, %arg1: i32) -> (i32, i32) {
    %c0_i32 = arith.constant 0 : i32
    %c0_i32_0 = arith.constant 0 : i32
    %c0_i32_1 = arith.constant 0 : i32
    return %c0_i32, %c0_i32_0 : i32, i32
  }
  func.func @transform_3(%arg0: i32, %arg1: i32) -> (i32, i32) {
    %c0_i32 = arith.constant 0 : i32
    %c0_i32_0 = arith.constant 0 : i32
    return %arg0, %c0_i32 : i32, i32
  }
  func.func @transform_4(%arg0: i32, %arg1: i32) -> (i32, i32) {
    %c0_i32 = arith.constant 0 : i32
    %c0_i32_0 = arith.constant 0 : i32
    return %arg0, %c0_i32 : i32, i32
  }
}

</mosaic_0001>

<llo_original>
// kernel: tpu_custom_call.1
$region0: #{tpu_custom_call.1}
  #allocation0 [shape = 'u32[]', space=smem, size = 0x4, offset = 0x4, fixed_abs, tag = 'smem constant byte address 0x4 - core index']
  #allocation1 [shape = 'u32[144,128]{1,0:T(1,128)}', space=vmem, size = 0x12000, scoped, tag = 'internal scratch']
  #allocation2 [shape = 'f32[8,128]{1,0:T(8,128)}', space=vmem, size = 0x1000, scoped, tag = 'scratch operand']
  %s0 = inlined_call_operand.hbm [shape: f32[8,8,384], index: 0, kind: input, shape index: {}]
  %s1 = inlined_call_operand.hbm [shape: f32[128,384], index: 1, kind: input, shape index: {}]
  %s2 = inlined_call_operand.vmem [shape: f32[1,128], index: 2, kind: input, shape index: {}]
  %s3 = inlined_call_operand.vmem [shape: f32[8,128], index: 3, kind: input, shape index: {}]
  %s4 = inlined_call_operand.hbm [shape: f32[8,128], index: 4, kind: output, shape index: {}]
  %s5 = sld [smem:[#allocation0]]
  $region42: #{tpu_custom_call.1} parent=0
    _
  %s7 = ssub.s32 1, %s5
  %s8 = scalar_select 0, %s7, %s5
  $region1: #{tpu_custom_call.1} parent=0
    #allocation3 [shape = 'u8[98304]{0}', space=vmem, size = 0x18000, scoped, tag = 'input window, operand 0, single buffered']
    #allocation4 [shape = 's32[1]{0}', space=sflag, size = 0x4, scoped, tag = 'scoped memory for tpu_custom_call.1']
    #allocation5 [shape = 's32[1]{0}', space=sflag, size = 0x4, scoped, tag = 'scoped memory for tpu_custom_call.1']
    #allocation6 [shape = 'u8[196608]{0}', space=vmem, size = 0x30000, scoped, tag = 'input window, operand 1, single buffered']
    #allocation7 [shape = 's32[1]{0}', space=sflag, size = 0x4, scoped, tag = 'scoped memory for tpu_custom_call.1']
    #allocation8 [shape = 'u8[4096]{0}', space=vmem, size = 0x1000, scoped, tag = 'output window, operand 0, single buffered']
    %9 = vsyncpa [#allocation4], 0
    %10 = vsyncpa [#allocation7], 0
    %11 = vsyncpa [#allocation5], 0
    // Predicated region
    $region2: #{tpu_custom_call.1} parent=1 // pred_check
      _
    $region3: #{tpu_custom_call.1} parent=1 // pred_check_branch
      %13 = sbr.rel (0) target = $region5
    $region4: #{tpu_custom_call.1} parent=1 // pred_region
      %s15 = ssub.s32 3072, 3072
      %16 = vsyncadd [#allocation4], %s15
      %s17 = sshll.u32 [#allocation3], 4
      %s18 = int_to_ptr.vmem [resolvable:$true] %s17
      %23 = dma.hbm_to_vmem [thread:$0]  %s0, 3072, %s18, [#allocation4], 384, 384, 24
    $region5: #{tpu_custom_call.1} parent=1 // pred_fallthru
      _
    // Predicated region
    $region6: #{tpu_custom_call.1} parent=1 // pred_check
      _
    $region7: #{tpu_custom_call.1} parent=1 // pred_check_branch
      %25 = sbr.rel (0) target = $region9
    $region8: #{tpu_custom_call.1} parent=1 // pred_region
      %s27 = ssub.s32 6144, 6144
      %28 = vsyncadd [#allocation7], %s27
      %s29 = sshll.u32 [#allocation6], 4
      %s30 = int_to_ptr.vmem [resolvable:$true] %s29
      %35 = dma.hbm_to_vmem [thread:$0]  %s1, 6144, %s30, [#allocation7], 384, 384, 24
    $region9: #{tpu_custom_call.1} parent=1 // pred_fallthru
      _
    // Predicated region
    $region10: #{tpu_custom_call.1} parent=1 // pred_check
      _
    $region11: #{tpu_custom_call.1} parent=1 // pred_check_branch
      %37 = sbr.rel (0) target = $region13
    $region12: #{tpu_custom_call.1} parent=1 // pred_region
      _
    $region13: #{tpu_custom_call.1} parent=1 // pred_fallthru
      _
    // Predicated region
    $region14: #{tpu_custom_call.1} parent=1 // pred_check
      _
    $region15: #{tpu_custom_call.1} parent=1 // pred_check_branch
      %39 = sbr.rel (0) target = $region17
    $region16: #{tpu_custom_call.1} parent=1 // pred_region
      _
    $region17: #{tpu_custom_call.1} parent=1 // pred_fallthru
      _
    // Predicated region
    $region18: #{tpu_custom_call.1} parent=1 // pred_check
      _
    $region19: #{tpu_custom_call.1} parent=1 // pred_check_branch
      %41 = sbr.rel (0) target = $region21
    $region20: #{tpu_custom_call.1} parent=1 // pred_region
      %42 = dma.done [#allocation4], 3072
    $region21: #{tpu_custom_call.1} parent=1 // pred_fallthru
      _
    // Predicated region
    $region22: #{tpu_custom_call.1} parent=1 // pred_check
      _
    $region23: #{tpu_custom_call.1} parent=1 // pred_check_branch
      %44 = sbr.rel (0) target = $region25
    $region24: #{tpu_custom_call.1} parent=1 // pred_region
      %45 = dma.done [#allocation7], 6144
    $region25: #{tpu_custom_call.1} parent=1 // pred_fallthru
      _
    %p46 = scmp.eq.s32.totalorder 0, 0
    // Predicated region
    $region26: #{tpu_custom_call.1} parent=1 // pred_check
      %p47 = pneg %p46
    $region27: #{tpu_custom_call.1} parent=1 // pred_check_branch
      %49 = sbr.rel (%p47) target = $region29
    $region28: #{tpu_custom_call.1} parent=1 // pred_region
      %v50 = vld [vmem:[%s3] sm:$0xff]
      %51 = vst [vmem:[#allocation2] sm:$0xff] %v50
    $region29: #{tpu_custom_call.1} parent=1 // pred_fallthru
      _
    %v52 = vld [vmem:[#allocation2] sm:$0xff]
    %v53 = vld [vmem:[#allocation6] sm:$0xff]
    %v54 = vld [vmem:[#allocation6 + $0x8] sm:$0xff]
    %v55 = vld [vmem:[#allocation6 + $0x10] sm:$0xff]
    %v56 = vld [vmem:[#allocation6 + $0x18] sm:$0xff]
    %v57 = vld [vmem:[#allocation6 + $0x20] sm:$0xff]
    %v58 = vld [vmem:[#allocation6 + $0x28] sm:$0xff]
    %v59 = vld [vmem:[#allocation6 + $0x30] sm:$0xff]
    %v60 = vld [vmem:[#allocation6 + $0x38] sm:$0xff]
    %v61 = vld [vmem:[#allocation6 + $0x40] sm:$0xff]
    %v62 = vld [vmem:[#allocation6 + $0x48] sm:$0xff]
    %v63 = vld [vmem:[#allocation6 + $0x50] sm:$0xff]
    %v64 = vld [vmem:[#allocation6 + $0x58] sm:$0xff]
    %v65 = vld [vmem:[#allocation6 + $0x60] sm:$0xff]
    %v66 = vld [vmem:[#allocation6 + $0x68] sm:$0xff]
    %v67 = vld [vmem:[#allocation6 + $0x70] sm:$0xff]
    %v68 = vld [vmem:[#allocation6 + $0x78] sm:$0xff]
    %v69 = vld [vmem:[#allocation6 + $0x80] sm:$0xff]
    %v70 = vld [vmem:[#allocation6 + $0x88] sm:$0xff]
    %v71 = vld [vmem:[#allocation6 + $0x90] sm:$0xff]
    %v72 = vld [vmem:[#allocation6 + $0x98] sm:$0xff]
    %v73 = vld [vmem:[#allocation6 + $0xa0] sm:$0xff]
    %v74 = vld [vmem:[#allocation6 + $0xa8] sm:$0xff]
    %v75 = vld [vmem:[#allocation6 + $0xb0] sm:$0xff]
    %v76 = vld [vmem:[#allocation6 + $0xb8] sm:$0xff]
    %v77 = vld [vmem:[#allocation6 + $0xc0] sm:$0xff]
    %v78 = vld [vmem:[#allocation6 + $0xc8] sm:$0xff]
    %v79 = vld [vmem:[#allocation6 + $0xd0] sm:$0xff]
    %v80 = vld [vmem:[#allocation6 + $0xd8] sm:$0xff]
    %v81 = vld [vmem:[#allocation6 + $0xe0] sm:$0xff]
    %v82 = vld [vmem:[#allocation6 + $0xe8] sm:$0xff]
    %v83 = vld [vmem:[#allocation6 + $0xf0] sm:$0xff]
    %v84 = vld [vmem:[#allocation6 + $0xf8] sm:$0xff]
    %v85 = vld [vmem:[#allocation6 + $0x100] sm:$0xff]
    %v86 = vld [vmem:[#allocation6 + $0x108] sm:$0xff]
    %v87 = vld [vmem:[#allocation6 + $0x110] sm:$0xff]
    %v88 = vld [vmem:[#allocation6 + $0x118] sm:$0xff]
    %v89 = vld [vmem:[#allocation6 + $0x120] sm:$0xff]
    %v90 = vld [vmem:[#allocation6 + $0x128] sm:$0xff]
    %v91 = vld [vmem:[#allocation6 + $0x130] sm:$0xff]
    %v92 = vld [vmem:[#allocation6 + $0x138] sm:$0xff]
    %v93 = vld [vmem:[#allocation6 + $0x140] sm:$0xff]
    %v94 = vld [vmem:[#allocation6 + $0x148] sm:$0xff]
    %v95 = vld [vmem:[#allocation6 + $0x150] sm:$0xff]
    %v96 = vld [vmem:[#allocation6 + $0x158] sm:$0xff]
    %v97 = vld [vmem:[#allocation6 + $0x160] sm:$0xff]
    %v98 = vld [vmem:[#allocation6 + $0x168] sm:$0xff]
    %v99 = vld [vmem:[#allocation6 + $0x170] sm:$0xff]
    %v100 = vld [vmem:[#allocation6 + $0x178] sm:$0xff]
    %v101 = vld [vmem:[%s2] sm:$0x1]
    %v103 = vlaneseq
    %v104 = vshrl.u32 %v103, 7
    %v105 = vsub.s32 0, %v104
    %v106 = vrot.slane %v101, %v105
    %v108 = vld [vmem:[#allocation3] sm:$0xff]
    %v109 = vld [vmem:[#allocation3 + $0x8] sm:$0xff]
    %v110 = vld [vmem:[#allocation3 + $0x10] sm:$0xff]
    %111 = vmatprep.subr.mxu0 %v54
    %112 = vmatpush1.msra.mxu0 %v53
    %113 = vmatprep.subr.mxu0 %v57
    %114 = vmatpush1.msra.mxu0 %v56
    %115 = vmatprep.subr.mxu0 %v60
    %116 = vmatpush1.msra.mxu0 %v59
    %117 = vmatprep.subr.mxu0 %v63
    %118 = vmatpush1.msra.mxu0 %v62
    %119 = vmatprep.subr.mxu0 %v66
    %120 = vmatpush1.msra.mxu0 %v65
    %121 = vmatprep.subr.mxu0 %v69
    %122 = vmatpush1.msra.mxu0 %v68
    %123 = vmatprep.subr.mxu0 %v72
    %124 = vmatpush1.msra.mxu0 %v71
    %125 = vmatprep.subr.mxu0 %v75
    %126 = vmatpush1.msra.mxu0 %v74
    %127 = vmatprep.subr.mxu0 %v78
    %128 = vmatpush1.msra.mxu0 %v77
    %129 = vmatprep.subr.mxu0 %v81
    %130 = vmatpush1.msra.mxu0 %v80
    %131 = vmatprep.subr.mxu0 %v84
    %132 = vmatpush1.msra.mxu0 %v83
    %133 = vmatprep.subr.mxu0 %v87
    %134 = vmatpush1.msra.mxu0 %v86
    %135 = vmatprep.subr.mxu0 %v90
    %136 = vmatpush1.msra.mxu0 %v89
    %137 = vmatprep.subr.mxu0 %v93
    %138 = vmatpush1.msra.mxu0 %v92
    %139 = vmatprep.subr.mxu0 %v96
    %140 = vmatpush1.msra.mxu0 %v95
    %141 = vmatprep.subr.mxu0 %v99
    %142 = vmatpush1.msra.mxu0 %v98
    %143 = vmatprep.subr.mxu0 0.0
    %144 = vmatpush1.msra.mxu0 0.0
    %145 = vmatprep.subr.mxu0 0.0
    %146 = vmatpush1.msra.mxu0 0.0
    %147 = vmatprep.subr.mxu0 0.0
    %148 = vmatpush1.msra.mxu0 0.0
    %149 = vmatprep.subr.mxu0 0.0
    %150 = vmatpush1.msra.mxu0 0.0
    %151 = vmatprep.subr.mxu0 0.0
    %152 = vmatpush1.msra.mxu0 0.0
    %153 = vmatprep.subr.mxu0 0.0
    %154 = vmatpush1.msra.mxu0 0.0
    %155 = vmatprep.subr.mxu0 0.0
    %156 = vmatpush1.msra.mxu0 0.0
    %157 = vmatprep.subr.mxu0 0.0
    %158 = vmatpush1.msra.mxu0 0.0
    %159 = vmatprep.subr.mxu0 0.0
    %160 = vmatpush1.msra.mxu0 0.0
    %161 = vmatprep.subr.mxu0 0.0
    %162 = vmatpush1.msra.mxu0 0.0
    %163 = vmatprep.subr.mxu0 0.0
    %164 = vmatpush1.msra.mxu0 0.0
    %165 = vmatprep.subr.mxu0 0.0
    %166 = vmatpush1.msra.mxu0 0.0
    %167 = vmatprep.subr.mxu0 0.0
    %168 = vmatpush1.msra.mxu0 0.0
    %169 = vmatprep.subr.mxu0 0.0
    %170 = vmatpush1.msra.mxu0 0.0
    %171 = vmatprep.subr.mxu0 0.0
    %172 = vmatpush1.msra.mxu0 0.0
    %173 = vmatprep.subr.mxu0 0.0
    %174 = vmatpush1.msra.mxu0 0.0
    %175 = vmatprep.mubr.f32.mxu0 0.0
    %176 = vmatmul.mubr.f32.gmra.mrb[0].mxu0 %v52
    %v177 = vpop.f32.mrb[0].mxu0
    %v178 = vadd.f32 0.0, %v177
    %v179 = vpop.f32.mrb[0].mxu0
    %v180 = vadd.f32 0.0, %v179
    %181 = vdwg.mxu0
    %182 = vmatprep.subr.mxu0 0.0
    %183 = vmatpush1.msra.mxu0 %v55
    %184 = vmatprep.subr.mxu0 0.0
    %185 = vmatpush1.msra.mxu0 %v58
    %186 = vmatprep.subr.mxu0 0.0
    %187 = vmatpush1.msra.mxu0 %v61
    %188 = vmatprep.subr.mxu0 0.0
    %189 = vmatpush1.msra.mxu0 %v64
    %190 = vmatprep.subr.mxu0 0.0
    %191 = vmatpush1.msra.mxu0 %v67
    %192 = vmatprep.subr.mxu0 0.0
    %193 = vmatpush1.msra.mxu0 %v70
    %194 = vmatprep.subr.mxu0 0.0
    %195 = vmatpush1.msra.mxu0 %v73
    %196 = vmatprep.subr.mxu0 0.0
    %197 = vmatpush1.msra.mxu0 %v76
    %198 = vmatprep.subr.mxu0 0.0
    %199 = vmatpush1.msra.mxu0 %v79
    %200 = vmatprep.subr.mxu0 0.0
    %201 = vmatpush1.msra.mxu0 %v82
    %202 = vmatprep.subr.mxu0 0.0
    %203 = vmatpush1.msra.mxu0 %v85
    %204 = vmatprep.subr.mxu0 0.0
    %205 = vmatpush1.msra.mxu0 %v88
    %206 = vmatprep.subr.mxu0 0.0
    %207 = vmatpush1.msra.mxu0 %v91
    %208 = vmatprep.subr.mxu0 0.0
    %209 = vmatpush1.msra.mxu0 %v94
    %210 = vmatprep.subr.mxu0 0.0
    %211 = vmatpush1.msra.mxu0 %v97
    %212 = vmatprep.subr.mxu0 0.0
    %213 = vmatpush1.msra.mxu0 %v100
    %214 = vmatprep.subr.mxu0 0.0
    %215 = vmatpush1.msra.mxu0 0.0
    %216 = vmatprep.subr.mxu0 0.0
    %217 = vmatpush1.msra.mxu0 0.0
    %218 = vmatprep.subr.mxu0 0.0
    %219 = vmatpush1.msra.mxu0 0.0
    %220 = vmatprep.subr.mxu0 0.0
    %221 = vmatpush1.msra.mxu0 0.0
    %222 = vmatprep.subr.mxu0 0.0
    %223 = vmatpush1.msra.mxu0 0.0
    %224 = vmatprep.subr.mxu0 0.0
    %225 = vmatpush1.msra.mxu0 0.0
    %226 = vmatprep.subr.mxu0 0.0
    %227 = vmatpush1.msra.mxu0 0.0
    %228 = vmatprep.subr.mxu0 0.0
    %229 = vmatpush1.msra.mxu0 0.0
    %230 = vmatprep.subr.mxu0 0.0
    %231 = vmatpush1.msra.mxu0 0.0
    %232 = vmatprep.subr.mxu0 0.0
    %233 = vmatpush1.msra.mxu0 0.0
    %234 = vmatprep.subr.mxu0 0.0
    %235 = vmatpush1.msra.mxu0 0.0
    %236 = vmatprep.subr.mxu0 0.0
    %237 = vmatpush1.msra.mxu0 0.0
    %238 = vmatprep.subr.mxu0 0.0
    %239 = vmatpush1.msra.mxu0 0.0
    %240 = vmatprep.subr.mxu0 0.0
    %241 = vmatpush1.msra.mxu0 0.0
    %242 = vmatprep.subr.mxu0 0.0
    %243 = vmatpush1.msra.mxu0 0.0
    %244 = vmatprep.subr.mxu0 0.0
    %245 = vmatpush1.msra.mxu0 0.0
    %246 = vmatprep.mubr.f32.mxu0 0.0
    %247 = vmatmul.mubr.f32.gmra.mrb[0].mxu0 %v52
    %v248 = vpop.f32.mrb[0].mxu0
    %v249 = vadd.f32 0.0, %v248
    %v250 = vpop.f32.mrb[0].mxu0
    %251 = vdwg.mxu0
    %v252 = vadd.f32 %v108, %v178
    %v253 = vxor.u32 %v252, 2147483648
    %v254 = vmul.f32 %v253, 1.442695
    %v255 = vpow.pop %v254
    %v256 = vadd.f32 %v255, 1.0
    %v257 = vrcp.pop %v256
    %v258 = vmul.f32 1.0, %v257
    %v259 = vadd.f32 %v109, %v180
    %v260 = vxor.u32 %v259, 2147483648
    %v261 = vmul.f32 %v260, 1.442695
    %v262 = vpow.pop %v261
    %v263 = vadd.f32 %v262, 1.0
    %v264 = vrcp.pop %v263
    %v265 = vmul.f32 1.0, %v264
    %v266 = vadd.f32 %v249, %v106
    %v267 = vmul.f32 %v258, %v266
    %v268 = vadd.f32 %v110, %v267
    %v269 = vtanh.pop %v268
    %v270 = vsub.f32 %v52, %v269
    %v271 = vmul.f32 %v265, %v270
    %v272 = vadd.f32 %v269, %v271
    %s273 = scalar_lea.vmem [#allocation3], 24
    %v274 = vld [vmem:[%s273] sm:$0xff]
    %v275 = vld [vmem:[%s273 + $0x8] sm:$0xff]
    %v276 = vld [vmem:[%s273 + $0x10] sm:$0xff]
    %277 = vmatprep.subr.mxu0 %v54
    %278 = vmatpush1.msra.mxu0 %v53
    %279 = vmatprep.subr.mxu0 %v57
    %280 = vmatpush1.msra.mxu0 %v56
    %281 = vmatprep.subr.mxu0 %v60
    %282 = vmatpush1.msra.mxu0 %v59
    %283 = vmatprep.subr.mxu0 %v63
    %284 = vmatpush1.msra.mxu0 %v62
    %285 = vmatprep.subr.mxu0 %v66
    %286 = vmatpush1.msra.mxu0 %v65
    %287 = vmatprep.subr.mxu0 %v69
    %288 = vmatpush1.msra.mxu0 %v68
    %289 = vmatprep.subr.mxu0 %v72
    %290 = vmatpush1.msra.mxu0 %v71
    %291 = vmatprep.subr.mxu0 %v75
    %292 = vmatpush1.msra.mxu0 %v74
    %293 = vmatprep.subr.mxu0 %v78
    %294 = vmatpush1.msra.mxu0 %v77
    %295 = vmatprep.subr.mxu0 %v81
    %296 = vmatpush1.msra.mxu0 %v80
    %297 = vmatprep.subr.mxu0 %v84
    %298 = vmatpush1.msra.mxu0 %v83
    %299 = vmatprep.subr.mxu0 %v87
    %300 = vmatpush1.msra.mxu0 %v86
    %301 = vmatprep.subr.mxu0 %v90
    %302 = vmatpush1.msra.mxu0 %v89
    %303 = vmatprep.subr.mxu0 %v93
    %304 = vmatpush1.msra.mxu0 %v92
    %305 = vmatprep.subr.mxu0 %v96
    %306 = vmatpush1.msra.mxu0 %v95
    %307 = vmatprep.subr.mxu0 %v99
    %308 = vmatpush1.msra.mxu0 %v98
    %309 = vmatprep.subr.mxu0 0.0
    %310 = vmatpush1.msra.mxu0 0.0
    %311 = vmatprep.subr.mxu0 0.0
    %312 = vmatpush1.msra.mxu0 0.0
    %313 = vmatprep.subr.mxu0 0.0
    %314 = vmatpush1.msra.mxu0 0.0
    %315 = vmatprep.subr.mxu0 0.0
    %316 = vmatpush1.msra.mxu0 0.0
    %317 = vmatprep.subr.mxu0 0.0
    %318 = vmatpush1.msra.mxu0 0.0
    %319 = vmatprep.subr.mxu0 0.0
    %320 = vmatpush1.msra.mxu0 0.0
    %321 = vmatprep.subr.mxu0 0.0
    %322 = vmatpush1.msra.mxu0 0.0
    %323 = vmatprep.subr.mxu0 0.0
    %324 = vmatpush1.msra.mxu0 0.0
    %325 = vmatprep.subr.mxu0 0.0
    %326 = vmatpush1.msra.mxu0 0.0
    %327 = vmatprep.subr.mxu0 0.0
    %328 = vmatpush1.msra.mxu0 0.0
    %329 = vmatprep.subr.mxu0 0.0
    %330 = vmatpush1.msra.mxu0 0.0
    %331 = vmatprep.subr.mxu0 0.0
    %332 = vmatpush1.msra.mxu0 0.0
    %333 = vmatprep.subr.mxu0 0.0
    %334 = vmatpush1.msra.mxu0 0.0
    %335 = vmatprep.subr.mxu0 0.0
    %336 = vmatpush1.msra.mxu0 0.0
    %337 = vmatprep.subr.mxu0 0.0
    %338 = vmatpush1.msra.mxu0 0.0
    %339 = vmatprep.subr.mxu0 0.0
    %340 = vmatpush1.msra.mxu0 0.0
    %341 = vmatprep.mubr.f32.mxu0 0.0
    %342 = vmatmul.mubr.f32.gmra.mrb[0].mxu0 %v272
    %v343 = vpop.f32.mrb[0].mxu0
    %v344 = vadd.f32 0.0, %v343
    %v345 = vpop.f32.mrb[0].mxu0
    %v346 = vadd.f32 0.0, %v345
    %347 = vdwg.mxu0
    %348 = vmatprep.subr.mxu0 0.0
    %349 = vmatpush1.msra.mxu0 %v55
    %350 = vmatprep.subr.mxu0 0.0
    %351 = vmatpush1.msra.mxu0 %v58
    %352 = vmatprep.subr.mxu0 0.0
    %353 = vmatpush1.msra.mxu0 %v61
    %354 = vmatprep.subr.mxu0 0.0
    %355 = vmatpush1.msra.mxu0 %v64
    %356 = vmatprep.subr.mxu0 0.0
    %357 = vmatpush1.msra.mxu0 %v67
    %358 = vmatprep.subr.mxu0 0.0
    %359 = vmatpush1.msra.mxu0 %v70
    %360 = vmatprep.subr.mxu0 0.0
    %361 = vmatpush1.msra.mxu0 %v73
    %362 = vmatprep.subr.mxu0 0.0
    %363 = vmatpush1.msra.mxu0 %v76
    %364 = vmatprep.subr.mxu0 0.0
    %365 = vmatpush1.msra.mxu0 %v79
    %366 = vmatprep.subr.mxu0 0.0
    %367 = vmatpush1.msra.mxu0 %v82
    %368 = vmatprep.subr.mxu0 0.0
    %369 = vmatpush1.msra.mxu0 %v85
    %370 = vmatprep.subr.mxu0 0.0
    %371 = vmatpush1.msra.mxu0 %v88
    %372 = vmatprep.subr.mxu0 0.0
    %373 = vmatpush1.msra.mxu0 %v91
    %374 = vmatprep.subr.mxu0 0.0
    %375 = vmatpush1.msra.mxu0 %v94
    %376 = vmatprep.subr.mxu0 0.0
    %377 = vmatpush1.msra.mxu0 %v97
    %378 = vmatprep.subr.mxu0 0.0
    %379 = vmatpush1.msra.mxu0 %v100
    %380 = vmatprep.subr.mxu0 0.0
    %381 = vmatpush1.msra.mxu0 0.0
    %382 = vmatprep.subr.mxu0 0.0
    %383 = vmatpush1.msra.mxu0 0.0
    %384 = vmatprep.subr.mxu0 0.0
    %385 = vmatpush1.msra.mxu0 0.0
    %386 = vmatprep.subr.mxu0 0.0
    %387 = vmatpush1.msra.mxu0 0.0
    %388 = vmatprep.subr.mxu0 0.0
    %389 = vmatpush1.msra.mxu0 0.0
    %390 = vmatprep.subr.mxu0 0.0
    %391 = vmatpush1.msra.mxu0 0.0
    %392 = vmatprep.subr.mxu0 0.0
    %393 = vmatpush1.msra.mxu0 0.0
    %394 = vmatprep.subr.mxu0 0.0
    %395 = vmatpush1.msra.mxu0 0.0
    %396 = vmatprep.subr.mxu0 0.0
    %397 = vmatpush1.msra.mxu0 0.0
    %398 = vmatprep.subr.mxu0 0.0
    %399 = vmatpush1.msra.mxu0 0.0
    %400 = vmatprep.subr.mxu0 0.0
    %401 = vmatpush1.msra.mxu0 0.0
    %402 = vmatprep.subr.mxu0 0.0
    %403 = vmatpush1.msra.mxu0 0.0
    %404 = vmatprep.subr.mxu0 0.0
    %405 = vmatpush1.msra.mxu0 0.0
    %406 = vmatprep.subr.mxu0 0.0
    %407 = vmatpush1.msra.mxu0 0.0
    %408 = vmatprep.subr.mxu0 0.0
    %409 = vmatpush1.msra.mxu0 0.0
    %410 = vmatprep.subr.mxu0 0.0
    %411 = vmatpush1.msra.mxu0 0.0
    %412 = vmatprep.mubr.f32.mxu0 0.0
    %413 = vmatmul.mubr.f32.gmra.mrb[0].mxu0 %v272
    %v414 = vpop.f32.mrb[0].mxu0
    %v415 = vadd.f32 0.0, %v414
    %v416 = vpop.f32.mrb[0].mxu0
    %417 = vdwg.mxu0
    %v418 = vadd.f32 %v274, %v344
    %v419 = vxor.u32 %v418, 2147483648
    %v420 = vmul.f32 %v419, 1.442695
    %v421 = vpow.pop %v420
    %v422 = vadd.f32 %v421, 1.0
    %v423 = vrcp.pop %v422
    %v424 = vmul.f32 1.0, %v423
    %v425 = vadd.f32 %v275, %v346
    %v426 = vxor.u32 %v425, 2147483648
    %v427 = vmul.f32 %v426, 1.442695
    %v428 = vpow.pop %v427
    %v429 = vadd.f32 %v428, 1.0
    %v430 = vrcp.pop %v429
    %v431 = vmul.f32 1.0, %v430
    %v432 = vadd.f32 %v415, %v106
    %v433 = vmul.f32 %v424, %v432
    %v434 = vadd.f32 %v276, %v433
    %v435 = vtanh.pop %v434
    %v436 = vsub.f32 %v272, %v435
    %v437 = vmul.f32 %v431, %v436
    %v438 = vadd.f32 %v435, %v437
    %s439 = scalar_lea.vmem [#allocation3], 48
    %v440 = vld [vmem:[%s439] sm:$0xff]
    %v441 = vld [vmem:[%s439 + $0x8] sm:$0xff]
    %v442 = vld [vmem:[%s439 + $0x10] sm:$0xff]
    %443 = vmatprep.subr.mxu0 %v54
    %444 = vmatpush1.msra.mxu0 %v53
    %445 = vmatprep.subr.mxu0 %v57
    %446 = vmatpush1.msra.mxu0 %v56
    %447 = vmatprep.subr.mxu0 %v60
    %448 = vmatpush1.msra.mxu0 %v59
    %449 = vmatprep.subr.mxu0 %v63
    %450 = vmatpush1.msra.mxu0 %v62
    %451 = vmatprep.subr.mxu0 %v66
    %452 = vmatpush1.msra.mxu0 %v65
    %453 = vmatprep.subr.mxu0 %v69
    %454 = vmatpush1.msra.mxu0 %v68
    %455 = vmatprep.subr.mxu0 %v72
    %456 = vmatpush1.msra.mxu0 %v71
    %457 = vmatprep.subr.mxu0 %v75
    %458 = vmatpush1.msra.mxu0 %v74
    %459 = vmatprep.subr.mxu0 %v78
    %460 = vmatpush1.msra.mxu0 %v77
    %461 = vmatprep.subr.mxu0 %v81
    %462 = vmatpush1.msra.mxu0 %v80
    %463 = vmatprep.subr.mxu0 %v84
    %464 = vmatpush1.msra.mxu0 %v83
    %465 = vmatprep.subr.mxu0 %v87
    %466 = vmatpush1.msra.mxu0 %v86
    %467 = vmatprep.subr.mxu0 %v90
    %468 = vmatpush1.msra.mxu0 %v89
    %469 = vmatprep.subr.mxu0 %v93
    %470 = vmatpush1.msra.mxu0 %v92
    %471 = vmatprep.subr.mxu0 %v96
    %472 = vmatpush1.msra.mxu0 %v95
    %473 = vmatprep.subr.mxu0 %v99
    %474 = vmatpush1.msra.mxu0 %v98
    %475 = vmatprep.subr.mxu0 0.0
    %476 = vmatpush1.msra.mxu0 0.0
    %477 = vmatprep.subr.mxu0 0.0
    %478 = vmatpush1.msra.mxu0 0.0
    %479 = vmatprep.subr.mxu0 0.0
    %480 = vmatpush1.msra.mxu0 0.0
    %481 = vmatprep.subr.mxu0 0.0
    %482 = vmatpush1.msra.mxu0 0.0
    %483 = vmatprep.subr.mxu0 0.0
    %484 = vmatpush1.msra.mxu0 0.0
    %485 = vmatprep.subr.mxu0 0.0
    %486 = vmatpush1.msra.mxu0 0.0
    %487 = vmatprep.subr.mxu0 0.0
    %488 = vmatpush1.msra.mxu0 0.0
    %489 = vmatprep.subr.mxu0 0.0
    %490 = vmatpush1.msra.mxu0 0.0
    %491 = vmatprep.subr.mxu0 0.0
    %492 = vmatpush1.msra.mxu0 0.0
    %493 = vmatprep.subr.mxu0 0.0
    %494 = vmatpush1.msra.mxu0 0.0
    %495 = vmatprep.subr.mxu0 0.0
    %496 = vmatpush1.msra.mxu0 0.0
    %497 = vmatprep.subr.mxu0 0.0
    %498 = vmatpush1.msra.mxu0 0.0
    %499 = vmatprep.subr.mxu0 0.0
    %500 = vmatpush1.msra.mxu0 0.0
    %501 = vmatprep.subr.mxu0 0.0
    %502 = vmatpush1.msra.mxu0 0.0
    %503 = vmatprep.subr.mxu0 0.0
    %504 = vmatpush1.msra.mxu0 0.0
    %505 = vmatprep.subr.mxu0 0.0
    %506 = vmatpush1.msra.mxu0 0.0
    %507 = vmatprep.mubr.f32.mxu0 0.0
    %508 = vmatmul.mubr.f32.gmra.mrb[0].mxu0 %v438
    %v509 = vpop.f32.mrb[0].mxu0
    %v510 = vadd.f32 0.0, %v509
    %v511 = vpop.f32.mrb[0].mxu0
    %v512 = vadd.f32 0.0, %v511
    %513 = vdwg.mxu0
    %514 = vmatprep.subr.mxu0 0.0
    %515 = vmatpush1.msra.mxu0 %v55
    %516 = vmatprep.subr.mxu0 0.0
    %517 = vmatpush1.msra.mxu0 %v58
    %518 = vmatprep.subr.mxu0 0.0
    %519 = vmatpush1.msra.mxu0 %v61
    %520 = vmatprep.subr.mxu0 0.0
    %521 = vmatpush1.msra.mxu0 %v64
    %522 = vmatprep.subr.mxu0 0.0
    %523 = vmatpush1.msra.mxu0 %v67
    %524 = vmatprep.subr.mxu0 0.0
    %525 = vmatpush1.msra.mxu0 %v70
    %526 = vmatprep.subr.mxu0 0.0
    %527 = vmatpush1.msra.mxu0 %v73
    %528 = vmatprep.subr.mxu0 0.0
    %529 = vmatpush1.msra.mxu0 %v76
    %530 = vmatprep.subr.mxu0 0.0
    %531 = vmatpush1.msra.mxu0 %v79
    %532 = vmatprep.subr.mxu0 0.0
    %533 = vmatpush1.msra.mxu0 %v82
    %534 = vmatprep.subr.mxu0 0.0
    %535 = vmatpush1.msra.mxu0 %v85
    %536 = vmatprep.subr.mxu0 0.0
    %537 = vmatpush1.msra.mxu0 %v88
    %538 = vmatprep.subr.mxu0 0.0
    %539 = vmatpush1.msra.mxu0 %v91
    %540 = vmatprep.subr.mxu0 0.0
    %541 = vmatpush1.msra.mxu0 %v94
    %542 = vmatprep.subr.mxu0 0.0
    %543 = vmatpush1.msra.mxu0 %v97
    %544 = vmatprep.subr.mxu0 0.0
    %545 = vmatpush1.msra.mxu0 %v100
    %546 = vmatprep.subr.mxu0 0.0
    %547 = vmatpush1.msra.mxu0 0.0
    %548 = vmatprep.subr.mxu0 0.0
    %549 = vmatpush1.msra.mxu0 0.0
    %550 = vmatprep.subr.mxu0 0.0
    %551 = vmatpush1.msra.mxu0 0.0
    %552 = vmatprep.subr.mxu0 0.0
    %553 = vmatpush1.msra.mxu0 0.0
    %554 = vmatprep.subr.mxu0 0.0
    %555 = vmatpush1.msra.mxu0 0.0
    %556 = vmatprep.subr.mxu0 0.0
    %557 = vmatpush1.msra.mxu0 0.0
    %558 = vmatprep.subr.mxu0 0.0
    %559 = vmatpush1.msra.mxu0 0.0
    %560 = vmatprep.subr.mxu0 0.0
    %561 = vmatpush1.msra.mxu0 0.0
    %562 = vmatprep.subr.mxu0 0.0
    %563 = vmatpush1.msra.mxu0 0.0
    %564 = vmatprep.subr.mxu0 0.0
    %565 = vmatpush1.msra.mxu0 0.0
    %566 = vmatprep.subr.mxu0 0.0
    %567 = vmatpush1.msra.mxu0 0.0
    %568 = vmatprep.subr.mxu0 0.0
    %569 = vmatpush1.msra.mxu0 0.0
    %570 = vmatprep.subr.mxu0 0.0
    %571 = vmatpush1.msra.mxu0 0.0
    %572 = vmatprep.subr.mxu0 0.0
    %573 = vmatpush1.msra.mxu0 0.0
    %574 = vmatprep.subr.mxu0 0.0
    %575 = vmatpush1.msra.mxu0 0.0
    %576 = vmatprep.subr.mxu0 0.0
    %577 = vmatpush1.msra.mxu0 0.0
    %578 = vmatprep.mubr.f32.mxu0 0.0
    %579 = vmatmul.mubr.f32.gmra.mrb[0].mxu0 %v438
    %v580 = vpop.f32.mrb[0].mxu0
    %v581 = vadd.f32 0.0, %v580
    %v582 = vpop.f32.mrb[0].mxu0
    %583 = vdwg.mxu0
    %v584 = vadd.f32 %v440, %v510
    %v585 = vxor.u32 %v584, 2147483648
    %v586 = vmul.f32 %v585, 1.442695
    %v587 = vpow.pop %v586
    %v588 = vadd.f32 %v587, 1.0
    %v589 = vrcp.pop %v588
    %v590 = vmul.f32 1.0, %v589
    %v591 = vadd.f32 %v441, %v512
    %v592 = vxor.u32 %v591, 2147483648
    %v593 = vmul.f32 %v592, 1.442695
    %v594 = vpow.pop %v593
    %v595 = vadd.f32 %v594, 1.0
    %v596 = vrcp.pop %v595
    %v597 = vmul.f32 1.0, %v596
    %v598 = vadd.f32 %v581, %v106
    %v599 = vmul.f32 %v590, %v598
    %v600 = vadd.f32 %v442, %v599
    %v601 = vtanh.pop %v600
    %v602 = vsub.f32 %v438, %v601
    %v603 = vmul.f32 %v597, %v602
    %v604 = vadd.f32 %v601, %v603
    %s605 = scalar_lea.vmem [#allocation3], 72
    %v606 = vld [vmem:[%s605] sm:$0xff]
    %v607 = vld [vmem:[%s605 + $0x8] sm:$0xff]
    %v608 = vld [vmem:[%s605 + $0x10] sm:$0xff]
    %609 = vmatprep.subr.mxu0 %v54
    %610 = vmatpush1.msra.mxu0 %v53
    %611 = vmatprep.subr.mxu0 %v57
    %612 = vmatpush1.msra.mxu0 %v56
    %613 = vmatprep.subr.mxu0 %v60
    %614 = vmatpush1.msra.mxu0 %v59
    %615 = vmatprep.subr.mxu0 %v63
    %616 = vmatpush1.msra.mxu0 %v62
    %617 = vmatprep.subr.mxu0 %v66
    %618 = vmatpush1.msra.mxu0 %v65
    %619 = vmatprep.subr.mxu0 %v69
    %620 = vmatpush1.msra.mxu0 %v68
    %621 = vmatprep.subr.mxu0 %v72
    %622 = vmatpush1.msra.mxu0 %v71
    %623 = vmatprep.subr.mxu0 %v75
    %624 = vmatpush1.msra.mxu0 %v74
    %625 = vmatprep.subr.mxu0 %v78
    %626 = vmatpush1.msra.mxu0 %v77
    %627 = vmatprep.subr.mxu0 %v81
    %628 = vmatpush1.msra.mxu0 %v80
    %629 = vmatprep.subr.mxu0 %v84
    %630 = vmatpush1.msra.mxu0 %v83
    %631 = vmatprep.subr.mxu0 %v87
    %632 = vmatpush1.msra.mxu0 %v86
    %633 = vmatprep.subr.mxu0 %v90
    %634 = vmatpush1.msra.mxu0 %v89
    %635 = vmatprep.subr.mxu0 %v93
    %636 = vmatpush1.msra.mxu0 %v92
    %637 = vmatprep.subr.mxu0 %v96
    %638 = vmatpush1.msra.mxu0 %v95
    %639 = vmatprep.subr.mxu0 %v99
    %640 = vmatpush1.msra.mxu0 %v98
    %641 = vmatprep.subr.mxu0 0.0
    %642 = vmatpush1.msra.mxu0 0.0
    %643 = vmatprep.subr.mxu0 0.0
    %644 = vmatpush1.msra.mxu0 0.0
    %645 = vmatprep.subr.mxu0 0.0
    %646 = vmatpush1.msra.mxu0 0.0
    %647 = vmatprep.subr.mxu0 0.0
    %648 = vmatpush1.msra.mxu0 0.0
    %649 = vmatprep.subr.mxu0 0.0
    %650 = vmatpush1.msra.mxu0 0.0
    %651 = vmatprep.subr.mxu0 0.0
    %652 = vmatpush1.msra.mxu0 0.0
    %653 = vmatprep.subr.mxu0 0.0
    %654 = vmatpush1.msra.mxu0 0.0
    %655 = vmatprep.subr.mxu0 0.0
    %656 = vmatpush1.msra.mxu0 0.0
    %657 = vmatprep.subr.mxu0 0.0
    %658 = vmatpush1.msra.mxu0 0.0
    %659 = vmatprep.subr.mxu0 0.0
    %660 = vmatpush1.msra.mxu0 0.0
    %661 = vmatprep.subr.mxu0 0.0
    %662 = vmatpush1.msra.mxu0 0.0
    %663 = vmatprep.subr.mxu0 0.0
    %664 = vmatpush1.msra.mxu0 0.0
    %665 = vmatprep.subr.mxu0 0.0
    %666 = vmatpush1.msra.mxu0 0.0
    %667 = vmatprep.subr.mxu0 0.0
    %668 = vmatpush1.msra.mxu0 0.0
    %669 = vmatprep.subr.mxu0 0.0
    %670 = vmatpush1.msra.mxu0 0.0
    %671 = vmatprep.subr.mxu0 0.0
    %672 = vmatpush1.msra.mxu0 0.0
    %673 = vmatprep.mubr.f32.mxu0 0.0
    %674 = vmatmul.mubr.f32.gmra.mrb[0].mxu0 %v604
    %v675 = vpop.f32.mrb[0].mxu0
    %v676 = vadd.f32 0.0, %v675
    %v677 = vpop.f32.mrb[0].mxu0
    %v678 = vadd.f32 0.0, %v677
    %679 = vdwg.mxu0
    %680 = vmatprep.subr.mxu0 0.0
    %681 = vmatpush1.msra.mxu0 %v55
    %682 = vmatprep.subr.mxu0 0.0
    %683 = vmatpush1.msra.mxu0 %v58
    %684 = vmatprep.subr.mxu0 0.0
    %685 = vmatpush1.msra.mxu0 %v61
    %686 = vmatprep.subr.mxu0 0.0
    %687 = vmatpush1.msra.mxu0 %v64
    %688 = vmatprep.subr.mxu0 0.0
    %689 = vmatpush1.msra.mxu0 %v67
    %690 = vmatprep.subr.mxu0 0.0
    %691 = vmatpush1.msra.mxu0 %v70
    %692 = vmatprep.subr.mxu0 0.0
    %693 = vmatpush1.msra.mxu0 %v73
    %694 = vmatprep.subr.mxu0 0.0
    %695 = vmatpush1.msra.mxu0 %v76
    %696 = vmatprep.subr.mxu0 0.0
    %697 = vmatpush1.msra.mxu0 %v79
    %698 = vmatprep.subr.mxu0 0.0
    %699 = vmatpush1.msra.mxu0 %v82
    %700 = vmatprep.subr.mxu0 0.0
    %701 = vmatpush1.msra.mxu0 %v85
    %702 = vmatprep.subr.mxu0 0.0
    %703 = vmatpush1.msra.mxu0 %v88
    %704 = vmatprep.subr.mxu0 0.0
    %705 = vmatpush1.msra.mxu0 %v91
    %706 = vmatprep.subr.mxu0 0.0
    %707 = vmatpush1.msra.mxu0 %v94
    %708 = vmatprep.subr.mxu0 0.0
    %709 = vmatpush1.msra.mxu0 %v97
    %710 = vmatprep.subr.mxu0 0.0
    %711 = vmatpush1.msra.mxu0 %v100
    %712 = vmatprep.subr.mxu0 0.0
    %713 = vmatpush1.msra.mxu0 0.0
    %714 = vmatprep.subr.mxu0 0.0
    %715 = vmatpush1.msra.mxu0 0.0
    %716 = vmatprep.subr.mxu0 0.0
    %717 = vmatpush1.msra.mxu0 0.0
    %718 = vmatprep.subr.mxu0 0.0
    %719 = vmatpush1.msra.mxu0 0.0
    %720 = vmatprep.subr.mxu0 0.0
    %721 = vmatpush1.msra.mxu0 0.0
    %722 = vmatprep.subr.mxu0 0.0
    %723 = vmatpush1.msra.mxu0 0.0
    %724 = vmatprep.subr.mxu0 0.0
    %725 = vmatpush1.msra.mxu0 0.0
    %726 = vmatprep.subr.mxu0 0.0
    %727 = vmatpush1.msra.mxu0 0.0
    %728 = vmatprep.subr.mxu0 0.0
    %729 = vmatpush1.msra.mxu0 0.0
    %730 = vmatprep.subr.mxu0 0.0
    %731 = vmatpush1.msra.mxu0 0.0
    %732 = vmatprep.subr.mxu0 0.0
    %733 = vmatpush1.msra.mxu0 0.0
    %734 = vmatprep.subr.mxu0 0.0
    %735 = vmatpush1.msra.mxu0 0.0
    %736 = vmatprep.subr.mxu0 0.0
    %737 = vmatpush1.msra.mxu0 0.0
    %738 = vmatprep.subr.mxu0 0.0
    %739 = vmatpush1.msra.mxu0 0.0
    %740 = vmatprep.subr.mxu0 0.0
    %741 = vmatpush1.msra.mxu0 0.0
    %742 = vmatprep.subr.mxu0 0.0
    %743 = vmatpush1.msra.mxu0 0.0
    %744 = vmatprep.mubr.f32.mxu0 0.0
    %745 = vmatmul.mubr.f32.gmra.mrb[0].mxu0 %v604
    %v746 = vpop.f32.mrb[0].mxu0
    %v747 = vadd.f32 0.0, %v746
    %v748 = vpop.f32.mrb[0].mxu0
    %749 = vdwg.mxu0
    %v750 = vadd.f32 %v606, %v676
    %v751 = vxor.u32 %v750, 2147483648
    %v752 = vmul.f32 %v751, 1.442695
    %v753 = vpow.pop %v752
    %v754 = vadd.f32 %v753, 1.0
    %v755 = vrcp.pop %v754
    %v756 = vmul.f32 1.0, %v755
    %v757 = vadd.f32 %v607, %v678
    %v758 = vxor.u32 %v757, 2147483648
    %v759 = vmul.f32 %v758, 1.442695
    %v760 = vpow.pop %v759
    %v761 = vadd.f32 %v760, 1.0
    %v762 = vrcp.pop %v761
    %v763 = vmul.f32 1.0, %v762
    %v764 = vadd.f32 %v747, %v106
    %v765 = vmul.f32 %v756, %v764
    %v766 = vadd.f32 %v608, %v765
    %v767 = vtanh.pop %v766
    %v768 = vsub.f32 %v604, %v767
    %v769 = vmul.f32 %v763, %v768
    %v770 = vadd.f32 %v767, %v769
    %s771 = scalar_lea.vmem [#allocation3], 96
    %v772 = vld [vmem:[%s771] sm:$0xff]
    %v773 = vld [vmem:[%s771 + $0x8] sm:$0xff]
    %v774 = vld [vmem:[%s771 + $0x10] sm:$0xff]
    %775 = vmatprep.subr.mxu0 %v54
    %776 = vmatpush1.msra.mxu0 %v53
    %777 = vmatprep.subr.mxu0 %v57
    %778 = vmatpush1.msra.mxu0 %v56
    %779 = vmatprep.subr.mxu0 %v60
    %780 = vmatpush1.msra.mxu0 %v59
    %781 = vmatprep.subr.mxu0 %v63
    %782 = vmatpush1.msra.mxu0 %v62
    %783 = vmatprep.subr.mxu0 %v66
    %784 = vmatpush1.msra.mxu0 %v65
    %785 = vmatprep.subr.mxu0 %v69
    %786 = vmatpush1.msra.mxu0 %v68
    %787 = vmatprep.subr.mxu0 %v72
    %788 = vmatpush1.msra.mxu0 %v71
    %789 = vmatprep.subr.mxu0 %v75
    %790 = vmatpush1.msra.mxu0 %v74
    %791 = vmatprep.subr.mxu0 %v78
    %792 = vmatpush1.msra.mxu0 %v77
    %793 = vmatprep.subr.mxu0 %v81
    %794 = vmatpush1.msra.mxu0 %v80
    %795 = vmatprep.subr.mxu0 %v84
    %796 = vmatpush1.msra.mxu0 %v83
    %797 = vmatprep.subr.mxu0 %v87
    %798 = vmatpush1.msra.mxu0 %v86
    %799 = vmatprep.subr.mxu0 %v90
    %800 = vmatpush1.msra.mxu0 %v89
    %801 = vmatprep.subr.mxu0 %v93
    %802 = vmatpush1.msra.mxu0 %v92
    %803 = vmatprep.subr.mxu0 %v96
    %804 = vmatpush1.msra.mxu0 %v95
    %805 = vmatprep.subr.mxu0 %v99
    %806 = vmatpush1.msra.mxu0 %v98
    %807 = vmatprep.subr.mxu0 0.0
    %808 = vmatpush1.msra.mxu0 0.0
    %809 = vmatprep.subr.mxu0 0.0
    %810 = vmatpush1.msra.mxu0 0.0
    %811 = vmatprep.subr.mxu0 0.0
    %812 = vmatpush1.msra.mxu0 0.0
    %813 = vmatprep.subr.mxu0 0.0
    %814 = vmatpush1.msra.mxu0 0.0
    %815 = vmatprep.subr.mxu0 0.0
    %816 = vmatpush1.msra.mxu0 0.0
    %817 = vmatprep.subr.mxu0 0.0
    %818 = vmatpush1.msra.mxu0 0.0
    %819 = vmatprep.subr.mxu0 0.0
    %820 = vmatpush1.msra.mxu0 0.0
    %821 = vmatprep.subr.mxu0 0.0
    %822 = vmatpush1.msra.mxu0 0.0
    %823 = vmatprep.subr.mxu0 0.0
    %824 = vmatpush1.msra.mxu0 0.0
    %825 = vmatprep.subr.mxu0 0.0
    %826 = vmatpush1.msra.mxu0 0.0
    %827 = vmatprep.subr.mxu0 0.0
    %828 = vmatpush1.msra.mxu0 0.0
    %829 = vmatprep.subr.mxu0 0.0
    %830 = vmatpush1.msra.mxu0 0.0
    %831 = vmatprep.subr.mxu0 0.0
    %832 = vmatpush1.msra.mxu0 0.0
    %833 = vmatprep.subr.mxu0 0.0
    %834 = vmatpush1.msra.mxu0 0.0
    %835 = vmatprep.subr.mxu0 0.0
    %836 = vmatpush1.msra.mxu0 0.0
    %837 = vmatprep.subr.mxu0 0.0
    %838 = vmatpush1.msra.mxu0 0.0
    %839 = vmatprep.mubr.f32.mxu0 0.0
    %840 = vmatmul.mubr.f32.gmra.mrb[0].mxu0 %v770
    %v841 = vpop.f32.mrb[0].mxu0
    %v842 = vadd.f32 0.0, %v841
    %v843 = vpop.f32.mrb[0].mxu0
    %v844 = vadd.f32 0.0, %v843
    %845 = vdwg.mxu0
    %846 = vmatprep.subr.mxu0 0.0
    %847 = vmatpush1.msra.mxu0 %v55
    %848 = vmatprep.subr.mxu0 0.0
    %849 = vmatpush1.msra.mxu0 %v58
    %850 = vmatprep.subr.mxu0 0.0
    %851 = vmatpush1.msra.mxu0 %v61
    %852 = vmatprep.subr.mxu0 0.0
    %853 = vmatpush1.msra.mxu0 %v64
    %854 = vmatprep.subr.mxu0 0.0
    %855 = vmatpush1.msra.mxu0 %v67
    %856 = vmatprep.subr.mxu0 0.0
    %857 = vmatpush1.msra.mxu0 %v70
    %858 = vmatprep.subr.mxu0 0.0
    %859 = vmatpush1.msra.mxu0 %v73
    %860 = vmatprep.subr.mxu0 0.0
    %861 = vmatpush1.msra.mxu0 %v76
    %862 = vmatprep.subr.mxu0 0.0
    %863 = vmatpush1.msra.mxu0 %v79
    %864 = vmatprep.subr.mxu0 0.0
    %865 = vmatpush1.msra.mxu0 %v82
    %866 = vmatprep.subr.mxu0 0.0
    %867 = vmatpush1.msra.mxu0 %v85
    %868 = vmatprep.subr.mxu0 0.0
    %869 = vmatpush1.msra.mxu0 %v88
    %870 = vmatprep.subr.mxu0 0.0
    %871 = vmatpush1.msra.mxu0 %v91
    %872 = vmatprep.subr.mxu0 0.0
    %873 = vmatpush1.msra.mxu0 %v94
    %874 = vmatprep.subr.mxu0 0.0
    %875 = vmatpush1.msra.mxu0 %v97
    %876 = vmatprep.subr.mxu0 0.0
    %877 = vmatpush1.msra.mxu0 %v100
    %878 = vmatprep.subr.mxu0 0.0
    %879 = vmatpush1.msra.mxu0 0.0
    %880 = vmatprep.subr.mxu0 0.0
    %881 = vmatpush1.msra.mxu0 0.0
    %882 = vmatprep.subr.mxu0 0.0
    %883 = vmatpush1.msra.mxu0 0.0
    %884 = vmatprep.subr.mxu0 0.0
    %885 = vmatpush1.msra.mxu0 0.0
    %886 = vmatprep.subr.mxu0 0.0
    %887 = vmatpush1.msra.mxu0 0.0
    %888 = vmatprep.subr.mxu0 0.0
    %889 = vmatpush1.msra.mxu0 0.0
    %890 = vmatprep.subr.mxu0 0.0
    %891 = vmatpush1.msra.mxu0 0.0
    %892 = vmatprep.subr.mxu0 0.0
    %893 = vmatpush1.msra.mxu0 0.0
    %894 = vmatprep.subr.mxu0 0.0
    %895 = vmatpush1.msra.mxu0 0.0
    %896 = vmatprep.subr.mxu0 0.0
    %897 = vmatpush1.msra.mxu0 0.0
    %898 = vmatprep.subr.mxu0 0.0
    %899 = vmatpush1.msra.mxu0 0.0
    %900 = vmatprep.subr.mxu0 0.0
    %901 = vmatpush1.msra.mxu0 0.0
    %902 = vmatprep.subr.mxu0 0.0
    %903 = vmatpush1.msra.mxu0 0.0
    %904 = vmatprep.subr.mxu0 0.0
    %905 = vmatpush1.msra.mxu0 0.0
    %906 = vmatprep.subr.mxu0 0.0
    %907 = vmatpush1.msra.mxu0 0.0
    %908 = vmatprep.subr.mxu0 0.0
    %909 = vmatpush1.msra.mxu0 0.0
    %910 = vmatprep.mubr.f32.mxu0 0.0
    %911 = vmatmul.mubr.f32.gmra.mrb[0].mxu0 %v770
    %v912 = vpop.f32.mrb[0].mxu0
    %v913 = vadd.f32 0.0, %v912
    %v914 = vpop.f32.mrb[0].mxu0
    %915 = vdwg.mxu0
    %v916 = vadd.f32 %v772, %v842
    %v917 = vxor.u32 %v916, 2147483648
    %v918 = vmul.f32 %v917, 1.442695
    %v919 = vpow.pop %v918
    %v920 = vadd.f32 %v919, 1.0
    %v921 = vrcp.pop %v920
    %v922 = vmul.f32 1.0, %v921
    %v923 = vadd.f32 %v773, %v844
    %v924 = vxor.u32 %v923, 2147483648
    %v925 = vmul.f32 %v924, 1.442695
    %v926 = vpow.pop %v925
    %v927 = vadd.f32 %v926, 1.0
    %v928 = vrcp.pop %v927
    %v929 = vmul.f32 1.0, %v928
    %v930 = vadd.f32 %v913, %v106
    %v931 = vmul.f32 %v922, %v930
    %v932 = vadd.f32 %v774, %v931
    %v933 = vtanh.pop %v932
    %v934 = vsub.f32 %v770, %v933
    %v935 = vmul.f32 %v929, %v934
    %v936 = vadd.f32 %v933, %v935
    %s937 = scalar_lea.vmem [#allocation3], 120
    %v938 = vld [vmem:[%s937] sm:$0xff]
    %v939 = vld [vmem:[%s937 + $0x8] sm:$0xff]
    %v940 = vld [vmem:[%s937 + $0x10] sm:$0xff]
    %941 = vmatprep.subr.mxu0 %v54
    %942 = vmatpush1.msra.mxu0 %v53
    %943 = vmatprep.subr.mxu0 %v57
    %944 = vmatpush1.msra.mxu0 %v56
    %945 = vmatprep.subr.mxu0 %v60
    %946 = vmatpush1.msra.mxu0 %v59
    %947 = vmatprep.subr.mxu0 %v63
    %948 = vmatpush1.msra.mxu0 %v62
    %949 = vmatprep.subr.mxu0 %v66
    %950 = vmatpush1.msra.mxu0 %v65
    %951 = vmatprep.subr.mxu0 %v69
    %952 = vmatpush1.msra.mxu0 %v68
    %953 = vmatprep.subr.mxu0 %v72
    %954 = vmatpush1.msra.mxu0 %v71
    %955 = vmatprep.subr.mxu0 %v75
    %956 = vmatpush1.msra.mxu0 %v74
    %957 = vmatprep.subr.mxu0 %v78
    %958 = vmatpush1.msra.mxu0 %v77
    %959 = vmatprep.subr.mxu0 %v81
    %960 = vmatpush1.msra.mxu0 %v80
    %961 = vmatprep.subr.mxu0 %v84
    %962 = vmatpush1.msra.mxu0 %v83
    %963 = vmatprep.subr.mxu0 %v87
    %964 = vmatpush1.msra.mxu0 %v86
    %965 = vmatprep.subr.mxu0 %v90
    %966 = vmatpush1.msra.mxu0 %v89
    %967 = vmatprep.subr.mxu0 %v93
    %968 = vmatpush1.msra.mxu0 %v92
    %969 = vmatprep.subr.mxu0 %v96
    %970 = vmatpush1.msra.mxu0 %v95
    %971 = vmatprep.subr.mxu0 %v99
    %972 = vmatpush1.msra.mxu0 %v98
    %973 = vmatprep.subr.mxu0 0.0
    %974 = vmatpush1.msra.mxu0 0.0
    %975 = vmatprep.subr.mxu0 0.0
    %976 = vmatpush1.msra.mxu0 0.0
    %977 = vmatprep.subr.mxu0 0.0
    %978 = vmatpush1.msra.mxu0 0.0
    %979 = vmatprep.subr.mxu0 0.0
    %980 = vmatpush1.msra.mxu0 0.0
    %981 = vmatprep.subr.mxu0 0.0
    %982 = vmatpush1.msra.mxu0 0.0
    %983 = vmatprep.subr.mxu0 0.0
    %984 = vmatpush1.msra.mxu0 0.0
    %985 = vmatprep.subr.mxu0 0.0
    %986 = vmatpush1.msra.mxu0 0.0
    %987 = vmatprep.subr.mxu0 0.0
    %988 = vmatpush1.msra.mxu0 0.0
    %989 = vmatprep.subr.mxu0 0.0
    %990 = vmatpush1.msra.mxu0 0.0
    %991 = vmatprep.subr.mxu0 0.0
    %992 = vmatpush1.msra.mxu0 0.0
    %993 = vmatprep.subr.mxu0 0.0
    %994 = vmatpush1.msra.mxu0 0.0
    %995 = vmatprep.subr.mxu0 0.0
    %996 = vmatpush1.msra.mxu0 0.0
    %997 = vmatprep.subr.mxu0 0.0
    %998 = vmatpush1.msra.mxu0 0.0
    %999 = vmatprep.subr.mxu0 0.0
    %1000 = vmatpush1.msra.mxu0 0.0
    %1001 = vmatprep.subr.mxu0 0.0
    %1002 = vmatpush1.msra.mxu0 0.0
    %1003 = vmatprep.subr.mxu0 0.0
    %1004 = vmatpush1.msra.mxu0 0.0
    %1005 = vmatprep.mubr.f32.mxu0 0.0
    %1006 = vmatmul.mubr.f32.gmra.mrb[0].mxu0 %v936
    %v1007 = vpop.f32.mrb[0].mxu0
    %v1008 = vadd.f32 0.0, %v1007
    %v1009 = vpop.f32.mrb[0].mxu0
    %v1010 = vadd.f32 0.0, %v1009
    %1011 = vdwg.mxu0
    %1012 = vmatprep.subr.mxu0 0.0
    %1013 = vmatpush1.msra.mxu0 %v55
    %1014 = vmatprep.subr.mxu0 0.0
    %1015 = vmatpush1.msra.mxu0 %v58
    %1016 = vmatprep.subr.mxu0 0.0
    %1017 = vmatpush1.msra.mxu0 %v61
    %1018 = vmatprep.subr.mxu0 0.0
    %1019 = vmatpush1.msra.mxu0 %v64
    %1020 = vmatprep.subr.mxu0 0.0
    %1021 = vmatpush1.msra.mxu0 %v67
    %1022 = vmatprep.subr.mxu0 0.0
    %1023 = vmatpush1.msra.mxu0 %v70
    %1024 = vmatprep.subr.mxu0 0.0
    %1025 = vmatpush1.msra.mxu0 %v73
    %1026 = vmatprep.subr.mxu0 0.0
    %1027 = vmatpush1.msra.mxu0 %v76
    %1028 = vmatprep.subr.mxu0 0.0
    %1029 = vmatpush1.msra.mxu0 %v79
    %1030 = vmatprep.subr.mxu0 0.0
    %1031 = vmatpush1.msra.mxu0 %v82
    %1032 = vmatprep.subr.mxu0 0.0
    %1033 = vmatpush1.msra.mxu0 %v85
    %1034 = vmatprep.subr.mxu0 0.0
    %1035 = vmatpush1.msra.mxu0 %v88
    %1036 = vmatprep.subr.mxu0 0.0
    %1037 = vmatpush1.msra.mxu0 %v91
    %1038 = vmatprep.subr.mxu0 0.0
    %1039 = vmatpush1.msra.mxu0 %v94
    %1040 = vmatprep.subr.mxu0 0.0
    %1041 = vmatpush1.msra.mxu0 %v97
    %1042 = vmatprep.subr.mxu0 0.0
    %1043 = vmatpush1.msra.mxu0 %v100
    %1044 = vmatprep.subr.mxu0 0.0
    %1045 = vmatpush1.msra.mxu0 0.0
    %1046 = vmatprep.subr.mxu0 0.0
    %1047 = vmatpush1.msra.mxu0 0.0
    %1048 = vmatprep.subr.mxu0 0.0
    %1049 = vmatpush1.msra.mxu0 0.0
    %1050 = vmatprep.subr.mxu0 0.0
    %1051 = vmatpush1.msra.mxu0 0.0
    %1052 = vmatprep.subr.mxu0 0.0
    %1053 = vmatpush1.msra.mxu0 0.0
    %1054 = vmatprep.subr.mxu0 0.0
    %1055 = vmatpush1.msra.mxu0 0.0
    %1056 = vmatprep.subr.mxu0 0.0
    %1057 = vmatpush1.msra.mxu0 0.0
    %1058 = vmatprep.subr.mxu0 0.0
    %1059 = vmatpush1.msra.mxu0 0.0
    %1060 = vmatprep.subr.mxu0 0.0
    %1061 = vmatpush1.msra.mxu0 0.0
    %1062 = vmatprep.subr.mxu0 0.0
    %1063 = vmatpush1.msra.mxu0 0.0
    %1064 = vmatprep.subr.mxu0 0.0
    %1065 = vmatpush1.msra.mxu0 0.0
    %1066 = vmatprep.subr.mxu0 0.0
    %1067 = vmatpush1.msra.mxu0 0.0
    %1068 = vmatprep.subr.mxu0 0.0
    %1069 = vmatpush1.msra.mxu0 0.0
    %1070 = vmatprep.subr.mxu0 0.0
    %1071 = vmatpush1.msra.mxu0 0.0
    %1072 = vmatprep.subr.mxu0 0.0
    %1073 = vmatpush1.msra.mxu0 0.0
    %1074 = vmatprep.subr.mxu0 0.0
    %1075 = vmatpush1.msra.mxu0 0.0
    %1076 = vmatprep.mubr.f32.mxu0 0.0
    %1077 = vmatmul.mubr.f32.gmra.mrb[0].mxu0 %v936
    %v1078 = vpop.f32.mrb[0].mxu0
    %v1079 = vadd.f32 0.0, %v1078
    %v1080 = vpop.f32.mrb[0].mxu0
    %1081 = vdwg.mxu0
    %v1082 = vadd.f32 %v938, %v1008
    %v1083 = vxor.u32 %v1082, 2147483648
    %v1084 = vmul.f32 %v1083, 1.442695
    %v1085 = vpow.pop %v1084
    %v1086 = vadd.f32 %v1085, 1.0
    %v1087 = vrcp.pop %v1086
    %v1088 = vmul.f32 1.0, %v1087
    %v1089 = vadd.f32 %v939, %v1010
    %v1090 = vxor.u32 %v1089, 2147483648
    %v1091 = vmul.f32 %v1090, 1.442695
    %v1092 = vpow.pop %v1091
    %v1093 = vadd.f32 %v1092, 1.0
    %v1094 = vrcp.pop %v1093
    %v1095 = vmul.f32 1.0, %v1094
    %v1096 = vadd.f32 %v1079, %v106
    %v1097 = vmul.f32 %v1088, %v1096
    %v1098 = vadd.f32 %v940, %v1097
    %v1099 = vtanh.pop %v1098
    %v1100 = vsub.f32 %v936, %v1099
    %v1101 = vmul.f32 %v1095, %v1100
    %v1102 = vadd.f32 %v1099, %v1101
    %s1103 = scalar_lea.vmem [#allocation3], 144
    %v1104 = vld [vmem:[%s1103] sm:$0xff]
    %v1105 = vld [vmem:[%s1103 + $0x8] sm:$0xff]
    %v1106 = vld [vmem:[%s1103 + $0x10] sm:$0xff]
    %1107 = vmatprep.subr.mxu0 %v54
    %1108 = vmatpush1.msra.mxu0 %v53
    %1109 = vmatprep.subr.mxu0 %v57
    %1110 = vmatpush1.msra.mxu0 %v56
    %1111 = vmatprep.subr.mxu0 %v60
    %1112 = vmatpush1.msra.mxu0 %v59
    %1113 = vmatprep.subr.mxu0 %v63
    %1114 = vmatpush1.msra.mxu0 %v62
    %1115 = vmatprep.subr.mxu0 %v66
    %1116 = vmatpush1.msra.mxu0 %v65
    %1117 = vmatprep.subr.mxu0 %v69
    %1118 = vmatpush1.msra.mxu0 %v68
    %1119 = vmatprep.subr.mxu0 %v72
    %1120 = vmatpush1.msra.mxu0 %v71
    %1121 = vmatprep.subr.mxu0 %v75
    %1122 = vmatpush1.msra.mxu0 %v74
    %1123 = vmatprep.subr.mxu0 %v78
    %1124 = vmatpush1.msra.mxu0 %v77
    %1125 = vmatprep.subr.mxu0 %v81
    %1126 = vmatpush1.msra.mxu0 %v80
    %1127 = vmatprep.subr.mxu0 %v84
    %1128 = vmatpush1.msra.mxu0 %v83
    %1129 = vmatprep.subr.mxu0 %v87
    %1130 = vmatpush1.msra.mxu0 %v86
    %1131 = vmatprep.subr.mxu0 %v90
    %1132 = vmatpush1.msra.mxu0 %v89
    %1133 = vmatprep.subr.mxu0 %v93
    %1134 = vmatpush1.msra.mxu0 %v92
    %1135 = vmatprep.subr.mxu0 %v96
    %1136 = vmatpush1.msra.mxu0 %v95
    %1137 = vmatprep.subr.mxu0 %v99
    %1138 = vmatpush1.msra.mxu0 %v98
    %1139 = vmatprep.subr.mxu0 0.0
    %1140 = vmatpush1.msra.mxu0 0.0
    %1141 = vmatprep.subr.mxu0 0.0
    %1142 = vmatpush1.msra.mxu0 0.0
    %1143 = vmatprep.subr.mxu0 0.0
    %1144 = vmatpush1.msra.mxu0 0.0
    %1145 = vmatprep.subr.mxu0 0.0
    %1146 = vmatpush1.msra.mxu0 0.0
    %1147 = vmatprep.subr.mxu0 0.0
    %1148 = vmatpush1.msra.mxu0 0.0
    %1149 = vmatprep.subr.mxu0 0.0
    %1150 = vmatpush1.msra.mxu0 0.0
    %1151 = vmatprep.subr.mxu0 0.0
    %1152 = vmatpush1.msra.mxu0 0.0
    %1153 = vmatprep.subr.mxu0 0.0
    %1154 = vmatpush1.msra.mxu0 0.0
    %1155 = vmatprep.subr.mxu0 0.0
    %1156 = vmatpush1.msra.mxu0 0.0
    %1157 = vmatprep.subr.mxu0 0.0
    %1158 = vmatpush1.msra.mxu0 0.0
    %1159 = vmatprep.subr.mxu0 0.0
    %1160 = vmatpush1.msra.mxu0 0.0
    %1161 = vmatprep.subr.mxu0 0.0
    %1162 = vmatpush1.msra.mxu0 0.0
    %1163 = vmatprep.subr.mxu0 0.0
    %1164 = vmatpush1.msra.mxu0 0.0
    %1165 = vmatprep.subr.mxu0 0.0
    %1166 = vmatpush1.msra.mxu0 0.0
    %1167 = vmatprep.subr.mxu0 0.0
    %1168 = vmatpush1.msra.mxu0 0.0
    %1169 = vmatprep.subr.mxu0 0.0
    %1170 = vmatpush1.msra.mxu0 0.0
    %1171 = vmatprep.mubr.f32.mxu0 0.0
    %1172 = vmatmul.mubr.f32.gmra.mrb[0].mxu0 %v1102
    %v1173 = vpop.f32.mrb[0].mxu0
    %v1174 = vadd.f32 0.0, %v1173
    %v1175 = vpop.f32.mrb[0].mxu0
    %v1176 = vadd.f32 0.0, %v1175
    %1177 = vdwg.mxu0
    %1178 = vmatprep.subr.mxu0 0.0
    %1179 = vmatpush1.msra.mxu0 %v55
    %1180 = vmatprep.subr.mxu0 0.0
    %1181 = vmatpush1.msra.mxu0 %v58
    %1182 = vmatprep.subr.mxu0 0.0
    %1183 = vmatpush1.msra.mxu0 %v61
    %1184 = vmatprep.subr.mxu0 0.0
    %1185 = vmatpush1.msra.mxu0 %v64
    %1186 = vmatprep.subr.mxu0 0.0
    %1187 = vmatpush1.msra.mxu0 %v67
    %1188 = vmatprep.subr.mxu0 0.0
    %1189 = vmatpush1.msra.mxu0 %v70
    %1190 = vmatprep.subr.mxu0 0.0
    %1191 = vmatpush1.msra.mxu0 %v73
    %1192 = vmatprep.subr.mxu0 0.0
    %1193 = vmatpush1.msra.mxu0 %v76
    %1194 = vmatprep.subr.mxu0 0.0
    %1195 = vmatpush1.msra.mxu0 %v79
    %1196 = vmatprep.subr.mxu0 0.0
    %1197 = vmatpush1.msra.mxu0 %v82
    %1198 = vmatprep.subr.mxu0 0.0
    %1199 = vmatpush1.msra.mxu0 %v85
    %1200 = vmatprep.subr.mxu0 0.0
    %1201 = vmatpush1.msra.mxu0 %v88
    %1202 = vmatprep.subr.mxu0 0.0
    %1203 = vmatpush1.msra.mxu0 %v91
    %1204 = vmatprep.subr.mxu0 0.0
    %1205 = vmatpush1.msra.mxu0 %v94
    %1206 = vmatprep.subr.mxu0 0.0
    %1207 = vmatpush1.msra.mxu0 %v97
    %1208 = vmatprep.subr.mxu0 0.0
    %1209 = vmatpush1.msra.mxu0 %v100
    %1210 = vmatprep.subr.mxu0 0.0
    %1211 = vmatpush1.msra.mxu0 0.0
    %1212 = vmatprep.subr.mxu0 0.0
    %1213 = vmatpush1.msra.mxu0 0.0
    %1214 = vmatprep.subr.mxu0 0.0
    %1215 = vmatpush1.msra.mxu0 0.0
    %1216 = vmatprep.subr.mxu0 0.0
    %1217 = vmatpush1.msra.mxu0 0.0
    %1218 = vmatprep.subr.mxu0 0.0
    %1219 = vmatpush1.msra.mxu0 0.0
    %1220 = vmatprep.subr.mxu0 0.0
    %1221 = vmatpush1.msra.mxu0 0.0
    %1222 = vmatprep.subr.mxu0 0.0
    %1223 = vmatpush1.msra.mxu0 0.0
    %1224 = vmatprep.subr.mxu0 0.0
    %1225 = vmatpush1.msra.mxu0 0.0
    %1226 = vmatprep.subr.mxu0 0.0
    %1227 = vmatpush1.msra.mxu0 0.0
    %1228 = vmatprep.subr.mxu0 0.0
    %1229 = vmatpush1.msra.mxu0 0.0
    %1230 = vmatprep.subr.mxu0 0.0
    %1231 = vmatpush1.msra.mxu0 0.0
    %1232 = vmatprep.subr.mxu0 0.0
    %1233 = vmatpush1.msra.mxu0 0.0
    %1234 = vmatprep.subr.mxu0 0.0
    %1235 = vmatpush1.msra.mxu0 0.0
    %1236 = vmatprep.subr.mxu0 0.0
    %1237 = vmatpush1.msra.mxu0 0.0
    %1238 = vmatprep.subr.mxu0 0.0
    %1239 = vmatpush1.msra.mxu0 0.0
    %1240 = vmatprep.subr.mxu0 0.0
    %1241 = vmatpush1.msra.mxu0 0.0
    %1242 = vmatprep.mubr.f32.mxu0 0.0
    %1243 = vmatmul.mubr.f32.gmra.mrb[0].mxu0 %v1102
    %v1244 = vpop.f32.mrb[0].mxu0
    %v1245 = vadd.f32 0.0, %v1244
    %v1246 = vpop.f32.mrb[0].mxu0
    %1247 = vdwg.mxu0
    %v1248 = vadd.f32 %v1104, %v1174
    %v1249 = vxor.u32 %v1248, 2147483648
    %v1250 = vmul.f32 %v1249, 1.442695
    %v1251 = vpow.pop %v1250
    %v1252 = vadd.f32 %v1251, 1.0
    %v1253 = vrcp.pop %v1252
    %v1254 = vmul.f32 1.0, %v1253
    %v1255 = vadd.f32 %v1105, %v1176
    %v1256 = vxor.u32 %v1255, 2147483648
    %v1257 = vmul.f32 %v1256, 1.442695
    %v1258 = vpow.pop %v1257
    %v1259 = vadd.f32 %v1258, 1.0
    %v1260 = vrcp.pop %v1259
    %v1261 = vmul.f32 1.0, %v1260
    %v1262 = vadd.f32 %v1245, %v106
    %v1263 = vmul.f32 %v1254, %v1262
    %v1264 = vadd.f32 %v1106, %v1263
    %v1265 = vtanh.pop %v1264
    %v1266 = vsub.f32 %v1102, %v1265
    %v1267 = vmul.f32 %v1261, %v1266
    %v1268 = vadd.f32 %v1265, %v1267
    %s1269 = scalar_lea.vmem [#allocation3], 168
    %v1270 = vld [vmem:[%s1269] sm:$0xff]
    %v1271 = vld [vmem:[%s1269 + $0x8] sm:$0xff]
    %v1272 = vld [vmem:[%s1269 + $0x10] sm:$0xff]
    %1273 = vmatprep.subr.mxu0 %v54
    %1274 = vmatpush1.msra.mxu0 %v53
    %1275 = vmatprep.subr.mxu0 %v57
    %1276 = vmatpush1.msra.mxu0 %v56
    %1277 = vmatprep.subr.mxu0 %v60
    %1278 = vmatpush1.msra.mxu0 %v59
    %1279 = vmatprep.subr.mxu0 %v63
    %1280 = vmatpush1.msra.mxu0 %v62
    %1281 = vmatprep.subr.mxu0 %v66
    %1282 = vmatpush1.msra.mxu0 %v65
    %1283 = vmatprep.subr.mxu0 %v69
    %1284 = vmatpush1.msra.mxu0 %v68
    %1285 = vmatprep.subr.mxu0 %v72
    %1286 = vmatpush1.msra.mxu0 %v71
    %1287 = vmatprep.subr.mxu0 %v75
    %1288 = vmatpush1.msra.mxu0 %v74
    %1289 = vmatprep.subr.mxu0 %v78
    %1290 = vmatpush1.msra.mxu0 %v77
    %1291 = vmatprep.subr.mxu0 %v81
    %1292 = vmatpush1.msra.mxu0 %v80
    %1293 = vmatprep.subr.mxu0 %v84
    %1294 = vmatpush1.msra.mxu0 %v83
    %1295 = vmatprep.subr.mxu0 %v87
    %1296 = vmatpush1.msra.mxu0 %v86
    %1297 = vmatprep.subr.mxu0 %v90
    %1298 = vmatpush1.msra.mxu0 %v89
    %1299 = vmatprep.subr.mxu0 %v93
    %1300 = vmatpush1.msra.mxu0 %v92
    %1301 = vmatprep.subr.mxu0 %v96
    %1302 = vmatpush1.msra.mxu0 %v95
    %1303 = vmatprep.subr.mxu0 %v99
    %1304 = vmatpush1.msra.mxu0 %v98
    %1305 = vmatprep.subr.mxu0 0.0
    %1306 = vmatpush1.msra.mxu0 0.0
    %1307 = vmatprep.subr.mxu0 0.0
    %1308 = vmatpush1.msra.mxu0 0.0
    %1309 = vmatprep.subr.mxu0 0.0
    %1310 = vmatpush1.msra.mxu0 0.0
    %1311 = vmatprep.subr.mxu0 0.0
    %1312 = vmatpush1.msra.mxu0 0.0
    %1313 = vmatprep.subr.mxu0 0.0
    %1314 = vmatpush1.msra.mxu0 0.0
    %1315 = vmatprep.subr.mxu0 0.0
    %1316 = vmatpush1.msra.mxu0 0.0
    %1317 = vmatprep.subr.mxu0 0.0
    %1318 = vmatpush1.msra.mxu0 0.0
    %1319 = vmatprep.subr.mxu0 0.0
    %1320 = vmatpush1.msra.mxu0 0.0
    %1321 = vmatprep.subr.mxu0 0.0
    %1322 = vmatpush1.msra.mxu0 0.0
    %1323 = vmatprep.subr.mxu0 0.0
    %1324 = vmatpush1.msra.mxu0 0.0
    %1325 = vmatprep.subr.mxu0 0.0
    %1326 = vmatpush1.msra.mxu0 0.0
    %1327 = vmatprep.subr.mxu0 0.0
    %1328 = vmatpush1.msra.mxu0 0.0
    %1329 = vmatprep.subr.mxu0 0.0
    %1330 = vmatpush1.msra.mxu0 0.0
    %1331 = vmatprep.subr.mxu0 0.0
    %1332 = vmatpush1.msra.mxu0 0.0
    %1333 = vmatprep.subr.mxu0 0.0
    %1334 = vmatpush1.msra.mxu0 0.0
    %1335 = vmatprep.subr.mxu0 0.0
    %1336 = vmatpush1.msra.mxu0 0.0
    %1337 = vmatprep.mubr.f32.mxu0 0.0
    %1338 = vmatmul.mubr.f32.gmra.mrb[0].mxu0 %v1268
    %v1339 = vpop.f32.mrb[0].mxu0
    %v1340 = vadd.f32 0.0, %v1339
    %v1341 = vpop.f32.mrb[0].mxu0
    %v1342 = vadd.f32 0.0, %v1341
    %1343 = vdwg.mxu0
    %1344 = vmatprep.subr.mxu0 0.0
    %1345 = vmatpush1.msra.mxu0 %v55
    %1346 = vmatprep.subr.mxu0 0.0
    %1347 = vmatpush1.msra.mxu0 %v58
    %1348 = vmatprep.subr.mxu0 0.0
    %1349 = vmatpush1.msra.mxu0 %v61
    %1350 = vmatprep.subr.mxu0 0.0
    %1351 = vmatpush1.msra.mxu0 %v64
    %1352 = vmatprep.subr.mxu0 0.0
    %1353 = vmatpush1.msra.mxu0 %v67
    %1354 = vmatprep.subr.mxu0 0.0
    %1355 = vmatpush1.msra.mxu0 %v70
    %1356 = vmatprep.subr.mxu0 0.0
    %1357 = vmatpush1.msra.mxu0 %v73
    %1358 = vmatprep.subr.mxu0 0.0
    %1359 = vmatpush1.msra.mxu0 %v76
    %1360 = vmatprep.subr.mxu0 0.0
    %1361 = vmatpush1.msra.mxu0 %v79
    %1362 = vmatprep.subr.mxu0 0.0
    %1363 = vmatpush1.msra.mxu0 %v82
    %1364 = vmatprep.subr.mxu0 0.0
    %1365 = vmatpush1.msra.mxu0 %v85
    %1366 = vmatprep.subr.mxu0 0.0
    %1367 = vmatpush1.msra.mxu0 %v88
    %1368 = vmatprep.subr.mxu0 0.0
    %1369 = vmatpush1.msra.mxu0 %v91
    %1370 = vmatprep.subr.mxu0 0.0
    %1371 = vmatpush1.msra.mxu0 %v94
    %1372 = vmatprep.subr.mxu0 0.0
    %1373 = vmatpush1.msra.mxu0 %v97
    %1374 = vmatprep.subr.mxu0 0.0
    %1375 = vmatpush1.msra.mxu0 %v100
    %1376 = vmatprep.subr.mxu0 0.0
    %1377 = vmatpush1.msra.mxu0 0.0
    %1378 = vmatprep.subr.mxu0 0.0
    %1379 = vmatpush1.msra.mxu0 0.0
    %1380 = vmatprep.subr.mxu0 0.0
    %1381 = vmatpush1.msra.mxu0 0.0
    %1382 = vmatprep.subr.mxu0 0.0
    %1383 = vmatpush1.msra.mxu0 0.0
    %1384 = vmatprep.subr.mxu0 0.0
    %1385 = vmatpush1.msra.mxu0 0.0
    %1386 = vmatprep.subr.mxu0 0.0
    %1387 = vmatpush1.msra.mxu0 0.0
    %1388 = vmatprep.subr.mxu0 0.0
    %1389 = vmatpush1.msra.mxu0 0.0
    %1390 = vmatprep.subr.mxu0 0.0
    %1391 = vmatpush1.msra.mxu0 0.0
    %1392 = vmatprep.subr.mxu0 0.0
    %1393 = vmatpush1.msra.mxu0 0.0
    %1394 = vmatprep.subr.mxu0 0.0
    %1395 = vmatpush1.msra.mxu0 0.0
    %1396 = vmatprep.subr.mxu0 0.0
    %1397 = vmatpush1.msra.mxu0 0.0
    %1398 = vmatprep.subr.mxu0 0.0
    %1399 = vmatpush1.msra.mxu0 0.0
    %1400 = vmatprep.subr.mxu0 0.0
    %1401 = vmatpush1.msra.mxu0 0.0
    %1402 = vmatprep.subr.mxu0 0.0
    %1403 = vmatpush1.msra.mxu0 0.0
    %1404 = vmatprep.subr.mxu0 0.0
    %1405 = vmatpush1.msra.mxu0 0.0
    %1406 = vmatprep.subr.mxu0 0.0
    %1407 = vmatpush1.msra.mxu0 0.0
    %1408 = vmatprep.mubr.f32.mxu0 0.0
    %1409 = vmatmul.mubr.f32.gmra.mrb[0].mxu0 %v1268
    %v1410 = vpop.f32.mrb[0].mxu0
    %v1411 = vadd.f32 0.0, %v1410
    %v1412 = vpop.f32.mrb[0].mxu0
    %1413 = vdwg.mxu0
    %v1414 = vadd.f32 %v1270, %v1340
    %v1415 = vxor.u32 %v1414, 2147483648
    %v1416 = vmul.f32 %v1415, 1.442695
    %v1417 = vpow.pop %v1416
    %v1418 = vadd.f32 %v1417, 1.0
    %v1419 = vrcp.pop %v1418
    %v1420 = vmul.f32 1.0, %v1419
    %v1421 = vadd.f32 %v1271, %v1342
    %v1422 = vxor.u32 %v1421, 2147483648
    %v1423 = vmul.f32 %v1422, 1.442695
    %v1424 = vpow.pop %v1423
    %v1425 = vadd.f32 %v1424, 1.0
    %v1426 = vrcp.pop %v1425
    %v1427 = vmul.f32 1.0, %v1426
    %v1428 = vadd.f32 %v1411, %v106
    %v1429 = vmul.f32 %v1420, %v1428
    %v1430 = vadd.f32 %v1272, %v1429
    %v1431 = vtanh.pop %v1430
    %v1432 = vsub.f32 %v1268, %v1431
    %v1433 = vmul.f32 %v1427, %v1432
    %v1434 = vadd.f32 %v1431, %v1433
    %1435 = vst [vmem:[#allocation2] sm:$0xff] %v1434
    // Predicated region
    $region30: #{tpu_custom_call.1} parent=1 // pred_check
      %p1436 = pneg %p46
    $region31: #{tpu_custom_call.1} parent=1 // pred_check_branch
      %1438 = sbr.rel (%p1436) target = $region33
    $region32: #{tpu_custom_call.1} parent=1 // pred_region
      %1439 = vst [vmem:[#allocation8] sm:$0xff] %v1434
    $region33: #{tpu_custom_call.1} parent=1 // pred_fallthru
      _
    // Predicated region
    $region34: #{tpu_custom_call.1} parent=1 // pred_check
      _
    $region35: #{tpu_custom_call.1} parent=1 // pred_check_branch
      %1441 = sbr.rel (0) target = $region37
    $region36: #{tpu_custom_call.1} parent=1 // pred_region
      %s1443 = ssub.s32 128, 128
      %1444 = vsyncadd [#allocation5], %s1443
      %s1446 = sshll.u32 [#allocation8], 4
      %s1447 = int_to_ptr.vmem [resolvable:$true] %s1446
      %1449 = dma.vmem_to_hbm [thread:$0]  %s1447, 128, %s4, [#allocation5]
    $region37: #{tpu_custom_call.1} parent=1 // pred_fallthru
      _
    // Predicated region
    $region38: #{tpu_custom_call.1} parent=1 // pred_check
      _
    $region39: #{tpu_custom_call.1} parent=1 // pred_check_branch
      %1451 = sbr.rel (0) target = $region41
    $region40: #{tpu_custom_call.1} parent=1 // pred_region
      %1452 = dma.done [#allocation5], 128
    $region41: #{tpu_custom_call.1} parent=1 // pred_fallthru
      _
    %1453 = vsyncpa [#allocation4], 1
    %1454 = vsyncpa [#allocation7], 1
    %1455 = vsyncpa [#allocation5], 1

</llo_original>
